<compile_context>
chip_gen: v6e
topology: v6e:2x2x1
jax: 0.10.0
libtpu: 0.0.40
codegen_flags: <defaults>
</compile_context>

<pallas_src>
import functools

import jax
import jax.numpy as jnp
from jax.experimental import pallas as pl
from jax.experimental.pallas import tpu as pltpu


def _nce_header_kernel(scale_ref, x_ref, gamma_ref, beta_ref, w_ref, b_ref,
                       o_ref, *, ln_eps, l2_eps):
    # scale_ref: (1,) f32 in SMEM
    # x_ref:     (TM, D) rows tile
    # gamma_ref, beta_ref, b_ref: (1, D)
    # w_ref:     (D, D) already transposed to (in, out)
    # o_ref:     (TM, D)
    x = x_ref[...].astype(jnp.float32)

    # --- LayerNorm over the hidden (last) dim ---
    mean = jnp.mean(x, axis=-1, keepdims=True)
    xc = x - mean
    var = jnp.mean(xc * xc, axis=-1, keepdims=True)
    xn = xc * jax.lax.rsqrt(var + ln_eps)
    xn = xn * gamma_ref[...] + beta_ref[...]

    # --- Dropout(p=0.0) is the identity for this module's default config ---
    # TODO(synk): stochastic dropout (p > 0) would need pltpu.prng_seed /
    # pltpu.prng_random_bits; not required for the reference forward pass.

    # --- Linear: xn @ W^T + b (weight pre-transposed in the wrapper) ---
    y = jnp.dot(xn, w_ref[...],
                preferred_element_type=jnp.float32,
                precision=jax.lax.Precision.HIGHEST)
    y = y + b_ref[...]

    # --- L2-normalize (F.normalize, p=2, eps=1e-12) fused with the learnable
    # logit scale: y * (scale / max(||y||, eps)).  The division happens on a
    # (TM, 1) column, so normalize+scale is a single (TM, D) vector multiply.
    norm = jnp.sqrt(jnp.sum(y * y, axis=-1, keepdims=True))
    inv = scale_ref[0] / jnp.maximum(norm, l2_eps)
    o_ref[...] = (y * inv).astype(o_ref.dtype)


def imagebind_nce_header(x, gamma, beta, weight, bias, log_logit_scale, *,
                         ln_eps=1e-5, l2_eps=1e-12, max_logit_scale=100.0,
                         block_rows=512):
    """Fused Pallas equivalent of ImageBindNceHeader().forward(x).

    x: (..., D); gamma/beta/bias: (D,); weight: (D, D) in PyTorch (out, in)
    layout; log_logit_scale: scalar.
    """
    orig_shape = x.shape
    D = orig_shape[-1]
    x2 = x.reshape(-1, D)
    M = x2.shape[0]

    # Row tile: multiple of 8 (sublane), capped at block_rows.  The grid uses
    # cdiv, so a ragged last block is handled by Pallas' boundary masking —
    # no wrapper-side pad/slice HBM round trips.
    def _round_up(a, b):
        return ((a + b - 1) // b) * b

    block_rows = max(8, _round_up(block_rows, 8))
    tm = min(block_rows, _round_up(M, 8))
    grid = (pl.cdiv(M, tm),)

    # Scalar logit scale: clip(exp(s), max) — tiny scalar op done outside the
    # kernel and fed through SMEM.
    scale = jnp.minimum(jnp.exp(log_logit_scale), max_logit_scale)
    scale = jnp.reshape(scale, (1,)).astype(jnp.float32)

    gamma2 = gamma.reshape(1, D).astype(jnp.float32)
    beta2 = beta.reshape(1, D).astype(jnp.float32)
    bias2 = bias.reshape(1, D).astype(jnp.float32)
    w_t = weight.T.astype(jnp.float32)  # (in, out) so the kernel does x @ w_t

    kernel = functools.partial(_nce_header_kernel, ln_eps=ln_eps, l2_eps=l2_eps)

    out = pl.pallas_call(
        kernel,
        out_shape=jax.ShapeDtypeStruct((M, D), x.dtype),
        grid_spec=pl.GridSpec(
            grid=grid,
            in_specs=[
                pl.BlockSpec(memory_space=pltpu.MemorySpace.SMEM),  # scale (1,)
                pl.BlockSpec((tm, D), lambda i: (i, 0)),            # x rows
                pl.BlockSpec((1, D), lambda i: (0, 0)),             # gamma
                pl.BlockSpec((1, D), lambda i: (0, 0)),             # beta
                pl.BlockSpec((D, D), lambda i: (0, 0)),             # W^T (resident)
                pl.BlockSpec((1, D), lambda i: (0, 0)),             # bias
            ],
            out_specs=pl.BlockSpec((tm, D), lambda i: (i, 0)),
        ),
        compiler_params=pltpu.CompilerParams(
            dimension_semantics=("parallel",),
        ),
    )(scale, x2, gamma2, beta2, w_t, bias2)

    return out.reshape(orig_shape)


def _reference_forward(x, gamma, beta, weight, bias, log_logit_scale,
                       ln_eps=1e-5, l2_eps=1e-12, max_logit_scale=100.0):
    """Plain-JAX reference matching the PyTorch module."""
    mean = jnp.mean(x, axis=-1, keepdims=True)
    var = jnp.mean((x - mean) ** 2, axis=-1, keepdims=True)
    xn = (x - mean) / jnp.sqrt(var + ln_eps) * gamma + beta
    y = jnp.dot(xn, weight.T, precision=jax.lax.Precision.HIGHEST) + bias
    norm = jnp.sqrt(jnp.sum(y * y, axis=-1, keepdims=True))
    y = y / jnp.maximum(norm, l2_eps)
    scale = jnp.minimum(jnp.exp(log_logit_scale), max_logit_scale)
    return scale * y


if __name__ == "__main__":
    key = jax.random.PRNGKey(0)
    D = 256  # model_dim default

    k1, k2, k3, k4, k5 = jax.random.split(key, 5)
    gamma = 1.0 + 0.1 * jax.random.normal(k2, (D,), dtype=jnp.float32)
    beta = 0.1 * jax.random.normal(k3, (D,), dtype=jnp.float32)
    weight = jax.random.normal(k4, (D, D), dtype=jnp.float32) / jnp.sqrt(D)
    bias = 0.1 * jax.random.normal(k5, (D,), dtype=jnp.float32)
    log_logit_scale = jnp.log(jnp.float32(5.0))  # logit_scale_init = 5.0

    # Test 1: batch=2, seq=8 — small row tile so the grid runs multiple steps.
    x = jax.random.normal(k1, (2, 8, D), dtype=jnp.float32)
    out = imagebind_nce_header(x, gamma, beta, weight, bias, log_logit_scale,
                               block_rows=8)
    out = jax.block_until_ready(out)
    ref = _reference_forward(x, gamma, beta, weight, bias, log_logit_scale)
    assert out.shape == x.shape and out.dtype == x.dtype
    assert jnp.allclose(out, ref, atol=1e-4, rtol=1e-4), (
        "Pallas ImageBindNceHeader mismatch vs reference (even case)")

    # Test 2: ragged row count (3*5=15 rows) exercises the masked last block.
    xr = jax.random.normal(jax.random.PRNGKey(1), (3, 5, D), dtype=jnp.float32)
    outr = imagebind_nce_header(xr, gamma, beta, weight, bias, log_logit_scale,
                                block_rows=8)
    outr = jax.block_until_ready(outr)
    refr = _reference_forward(xr, gamma, beta, weight, bias, log_logit_scale)
    assert outr.shape == xr.shape and outr.dtype == xr.dtype
    assert jnp.allclose(outr, refr, atol=1e-4, rtol=1e-4), (
        "Pallas ImageBindNceHeader mismatch vs reference (ragged case)")

    print("KERNEL_OK")
</pallas_src>

<mosaic_0001>
module attributes {stable_mosaic.version = 11 : i64} {
  func.func @_nce_header_kernel(%arg0: i32, %arg1: memref<1xf32, #tpu.memory_space<smem>>, %arg2: memref<8x256xf32, #tpu.memory_space<vmem>>, %arg3: memref<1x256xf32, #tpu.memory_space<vmem>>, %arg4: memref<1x256xf32, #tpu.memory_space<vmem>>, %arg5: memref<256x256xf32, #tpu.memory_space<vmem>>, %arg6: memref<1x256xf32, #tpu.memory_space<vmem>>, %arg7: memref<8x256xf32, #tpu.memory_space<vmem>>) attributes {dimension_semantics = [#tpu.dimension_semantics<parallel>], iteration_bounds = array<i64: 2>, scalar_prefetch = 0 : i64, scratch_operands = 0 : i64, tpu.core_type = #tpu.core_type<tc>, window_params = [{transform_indices = @transform_0, window_bounds = array<i64: 1>}, {transform_indices = @transform_1, window_bounds = array<i64: 8, 256>}, {pipeline_mode = #tpu.pipeline_mode<synchronous>, transform_indices = @transform_2, window_bounds = array<i64: 1, 256>}, {pipeline_mode = #tpu.pipeline_mode<synchronous>, transform_indices = @transform_3, window_bounds = array<i64: 1, 256>}, {pipeline_mode = #tpu.pipeline_mode<synchronous>, transform_indices = @transform_4, window_bounds = array<i64: 256, 256>}, {pipeline_mode = #tpu.pipeline_mode<synchronous>, transform_indices = @transform_5, window_bounds = array<i64: 1, 256>}, {transform_indices = @transform_6, window_bounds = array<i64: 8, 256>}]} {
    %c0 = arith.constant 0 : index
    %c0_0 = arith.constant 0 : index
    %0 = vector.load %arg2[%c0, %c0_0] : memref<8x256xf32, #tpu.memory_space<vmem>>, vector<8x256xf32>
    %cst = arith.constant dense<0.000000e+00> : vector<8xf32>
    %1 = vector.multi_reduction <add>, %0, %cst [1] : vector<8x256xf32> to vector<8xf32>
    %2 = vector.shape_cast %1 : vector<8xf32> to vector<8x1xf32>
    %cst_1 = arith.constant 2.560000e+02 : f32
    %3 = vector.broadcast %cst_1 : f32 to vector<8x1xf32>
    %4 = arith.divf %2, %3 : vector<8x1xf32>
    %5 = vector.broadcast %4 : vector<8x1xf32> to vector<8x256xf32>
    %6 = arith.subf %0, %5 : vector<8x256xf32>
    %7 = arith.mulf %6, %6 : vector<8x256xf32>
    %cst_2 = arith.constant dense<0.000000e+00> : vector<8xf32>
    %8 = vector.multi_reduction <add>, %7, %cst_2 [1] : vector<8x256xf32> to vector<8xf32>
    %9 = vector.shape_cast %8 : vector<8xf32> to vector<8x1xf32>
    %cst_3 = arith.constant 2.560000e+02 : f32
    %10 = vector.broadcast %cst_3 : f32 to vector<8x1xf32>
    %11 = arith.divf %9, %10 : vector<8x1xf32>
    %cst_4 = arith.constant 9.99999974E-6 : f32
    %12 = vector.broadcast %cst_4 : f32 to vector<8x1xf32>
    %13 = arith.addf %11, %12 : vector<8x1xf32>
    %14 = math.rsqrt %13 : vector<8x1xf32>
    %15 = vector.broadcast %14 : vector<8x1xf32> to vector<8x256xf32>
    %16 = arith.mulf %6, %15 : vector<8x256xf32>
    %c0_5 = arith.constant 0 : index
    %c0_6 = arith.constant 0 : index
    %17 = vector.load %arg3[%c0_5, %c0_6] : memref<1x256xf32, #tpu.memory_space<vmem>>, vector<1x256xf32>
    %18 = vector.broadcast %17 : vector<1x256xf32> to vector<8x256xf32>
    %19 = arith.mulf %16, %18 : vector<8x256xf32>
    %c0_7 = arith.constant 0 : index
    %c0_8 = arith.constant 0 : index
    %20 = vector.load %arg4[%c0_7, %c0_8] : memref<1x256xf32, #tpu.memory_space<vmem>>, vector<1x256xf32>
    %21 = vector.broadcast %20 : vector<1x256xf32> to vector<8x256xf32>
    %22 = arith.addf %19, %21 : vector<8x256xf32>
    %c0_9 = arith.constant 0 : index
    %c0_10 = arith.constant 0 : index
    %23 = vector.load %arg5[%c0_9, %c0_10] : memref<256x256xf32, #tpu.memory_space<vmem>>, vector<256x256xf32>
    %cst_11 = arith.constant dense<0.000000e+00> : vector<8x256xf32>
    %24 = tpu.matmul %22, %23, %cst_11 {dimension_numbers = #tpu.dot_dimension_numbers<[1], [0], [0], [1], [0, 0, 1, 1], [], []>, precision = #tpu.contract_precision<fp32>} : vector<8x256xf32>, vector<256x256xf32>, vector<8x256xf32> -> vector<8x256xf32>
    %c0_12 = arith.constant 0 : index
    %c0_13 = arith.constant 0 : index
    %25 = vector.load %arg6[%c0_12, %c0_13] : memref<1x256xf32, #tpu.memory_space<vmem>>, vector<1x256xf32>
    %26 = vector.broadcast %25 : vector<1x256xf32> to vector<8x256xf32>
    %27 = arith.addf %24, %26 : vector<8x256xf32>
    %28 = arith.mulf %27, %27 : vector<8x256xf32>
    %cst_14 = arith.constant dense<0.000000e+00> : vector<8xf32>
    %29 = vector.multi_reduction <add>, %28, %cst_14 [1] : vector<8x256xf32> to vector<8xf32>
    %30 = vector.shape_cast %29 : vector<8xf32> to vector<8x1xf32>
    %31 = math.sqrt %30 : vector<8x1xf32>
    %c0_15 = arith.constant 0 : index
    %32 = memref.load %arg1[%c0_15] : memref<1xf32, #tpu.memory_space<smem>>
    %cst_16 = arith.constant 9.99999996E-13 : f32
    %33 = vector.broadcast %cst_16 : f32 to vector<8x1xf32>
    %34 = arith.maximumf %31, %33 : vector<8x1xf32>
    %35 = vector.broadcast %32 : f32 to vector<8x1xf32>
    %36 = arith.divf %35, %34 : vector<8x1xf32>
    %37 = vector.broadcast %36 : vector<8x1xf32> to vector<8x256xf32>
    %38 = arith.mulf %27, %37 : vector<8x256xf32>
    %c0_17 = arith.constant 0 : index
    %c0_18 = arith.constant 0 : index
    %39 = vector.load %arg7[%c0_17, %c0_18] : memref<8x256xf32, #tpu.memory_space<vmem>>, vector<8x256xf32>
    tpu.vector_store %arg7[%c0_17, %c0_18], %38 {strides = array<i32>} : memref<8x256xf32, #tpu.memory_space<vmem>>, vector<8x256xf32>,
    return
  }
  func.func @transform_0(%arg0: i32) -> i32 {
    %c0_i32 = arith.constant 0 : i32
    %c0_i32_0 = arith.constant 0 : i32
    return %c0_i32 : i32
  }
  func.func @transform_1(%arg0: i32) -> (i32, i32) {
    %c0_i32 = arith.constant 0 : i32
    %c0_i32_0 = arith.constant 0 : i32
    return %arg0, %c0_i32 : i32, i32
  }
  func.func @transform_2(%arg0: i32) -> (i32, i32) {
    %c0_i32 = arith.constant 0 : i32
    %c0_i32_0 = arith.constant 0 : i32
    %c0_i32_1 = arith.constant 0 : i32
    return %c0_i32, %c0_i32_0 : i32, i32
  }
  func.func @transform_3(%arg0: i32) -> (i32, i32) {
    %c0_i32 = arith.constant 0 : i32
    %c0_i32_0 = arith.constant 0 : i32
    %c0_i32_1 = arith.constant 0 : i32
    return %c0_i32, %c0_i32_0 : i32, i32
  }
  func.func @transform_4(%arg0: i32) -> (i32, i32) {
    %c0_i32 = arith.constant 0 : i32
    %c0_i32_0 = arith.constant 0 : i32
    %c0_i32_1 = arith.constant 0 : i32
    return %c0_i32, %c0_i32_0 : i32, i32
  }
  func.func @transform_5(%arg0: i32) -> (i32, i32) {
    %c0_i32 = arith.constant 0 : i32
    %c0_i32_0 = arith.constant 0 : i32
    %c0_i32_1 = arith.constant 0 : i32
    return %c0_i32, %c0_i32_0 : i32, i32
  }
  func.func @transform_6(%arg0: i32) -> (i32, i32) {
    %c0_i32 = arith.constant 0 : i32
    %c0_i32_0 = arith.constant 0 : i32
    return %arg0, %c0_i32 : i32, i32
  }
}

</mosaic_0001>

<llo_original>
// kernel: tpu_custom_call.1
$region0: #{tpu_custom_call.1}
  #allocation0 [shape = 'u32[]', space=smem, size = 0x4, offset = 0x4, fixed_abs, tag = 'smem constant byte address 0x4 - core index']
  #allocation1 [shape = 'u32[144,128]{1,0:T(1,128)}', space=vmem, size = 0x12000, scoped, tag = 'internal scratch']
  #allocation2 [shape = 'f32[1]{0:T(128)S(6)}', space=smem, size = 0x200, scoped, tag = 'scoped memory for tpu_custom_call.1']
  %s0 = inlined_call_operand.<no memory space> [shape: f32[1], index: 0, kind: input, shape index: {}]
  %s1 = inlined_call_operand.hbm [shape: f32[16,256], index: 1, kind: input, shape index: {}]
  %s2 = inlined_call_operand.vmem [shape: f32[1,256], index: 2, kind: input, shape index: {}]
  %s3 = inlined_call_operand.vmem [shape: f32[1,256], index: 3, kind: input, shape index: {}]
  %s4 = inlined_call_operand.hbm [shape: f32[256,256], index: 4, kind: input, shape index: {}]
  %s5 = inlined_call_operand.vmem [shape: f32[1,256], index: 5, kind: input, shape index: {}]
  %s6 = inlined_call_operand.hbm [shape: f32[16,256], index: 6, kind: output, shape index: {}]
  %s7 = sld [smem:[#allocation0]]
  $region65: #{tpu_custom_call.1} parent=0
    _
  %s9 = ssub.s32 1, %s7
  %s10 = scalar_select 0, %s9, %s7
  %11 = sst [smem:[#allocation2]] %s0
  $region1: #{tpu_custom_call.1} parent=0
    #allocation3 [shape = 'u8[16384]{0}', space=vmem, size = 0x4000, scoped, tag = 'input window, operand 1']
    #allocation4 [shape = 's32[2]{0}', space=sflag, size = 0x8, scoped, tag = 'scoped memory for tpu_custom_call.1']
    #allocation5 [shape = 's32[2]{0}', space=sflag, size = 0x8, scoped, tag = 'scoped memory for tpu_custom_call.1']
    #allocation6 [shape = 'u8[262144]{0}', space=vmem, size = 0x40000, scoped, tag = 'input window, operand 4, single buffered']
    #allocation7 [shape = 's32[1]{0}', space=sflag, size = 0x4, scoped, tag = 'scoped memory for tpu_custom_call.1']
    #allocation8 [shape = 'u8[16384]{0}', space=vmem, size = 0x4000, scoped, tag = 'output window, operand 0']
    %12 = vsyncpa [#allocation4], 0
    %s13 = scalar_lea.sflag [#allocation4], 1
    %14 = vsyncpa %s13, 0
    %15 = vsyncpa [#allocation7], 0
    %16 = vsyncpa [#allocation5], 0
    %s17 = scalar_lea.sflag [#allocation5], 1
    %18 = vsyncpa %s17, 0
    loop: start=0, step=1, limit=4
    $region2: #{tpu_custom_call.1} parent=1 // loop_pre_header
      _
    $region3: #{tpu_custom_call.1} parent=1 // loop_header
      %s20 = sphi 0, %s24
      %p21 = scmp.ge.s32.totalorder %s20, 4
      %s28 = sphi 0, %s28
      %s30 = sphi 0, %s28
      %s31 = sphi 0, %s30
      %s45 = sphi 0, %s31
      %s51 = sphi 0, %s53
      %s54 = sphi 0, %s51
      %s55 = sphi 0, %s54
      %s71 = sphi 0, %s55
      %s75 = sphi 0, %s75
      %s77 = sphi 0, %s75
      %s78 = sphi 0, %s77
      %s92 = sphi 0, %s78
      %s96 = sphi 0, %s96
      %s98 = sphi 0, %s96
      %s99 = sphi 0, %s98
      %s113 = sphi 0, %s99
      %s117 = sphi 0, %s117
      %s119 = sphi 0, %s117
      %s120 = sphi 0, %s119
      %s134 = sphi 0, %s120
      %s138 = sphi 0, %s138
      %s140 = sphi 0, %s138
      %s141 = sphi 0, %s140
      %s155 = sphi 0, %s141
      %s161 = sphi 0, %s163
      %s164 = sphi 0, %s161
      %s165 = sphi 0, %s164
      %s181 = sphi 0, %s165
    $region4: #{tpu_custom_call.1} parent=1 // loop_header_branch
      %23 = sbr.rel (%p21) target = $region8
    $region5: #{tpu_custom_call.1} parent=1 // loop_body
      %s25 = ssub.s32 %s20, 1
      %s26 = ssub.s32 %s20, 2
      %s27 = sadd.s32 %s20, 1
      %s29 = sadd.s32 %s28, 1
      %p32 = scmp.eq.s32.totalorder %s20, 1
      %p33 = scmp.ne.s32.totalorder %s28, %s30
      %p34 = scmp.eq.s32.totalorder %s20, 0
      %p35 = por %p33, %p34
      %p36 = scmp.ne.s32.totalorder %s28, %s30
      %p37 = scmp.eq.s32.totalorder %s25, 1
      %p38 = por %p36, %p37
      %p39 = scmp.ne.s32.totalorder %s30, %s31
      %p40 = scmp.eq.s32.totalorder %s25, 0
      %p41 = por %p39, %p40
      %p42 = scmp.ne.s32.totalorder %s30, %s31
      %p43 = scmp.eq.s32.totalorder %s26, 1
      %p44 = por %p42, %p43
      %p46 = scmp.ne.s32.totalorder %s31, %s45
      %p47 = scmp.eq.s32.totalorder %s26, 0
      %p48 = por %p46, %p47
      %s49 = ssub.s32 %s20, %s27
      %p50 = scmp.eq.s32.totalorder %s49, 0
      %s52 = sadd.s32 %s51, 1
      %s53 = scalar_select %p50, %s51, %s52
      %p56 = pneg %p50
      %p57 = scmp.eq.s32.totalorder %s20, 1
      %p58 = por %p56, %p57
      %p59 = scmp.ne.s32.totalorder %s51, %s54
      %p60 = scmp.eq.s32.totalorder %s20, 0
      %p61 = por %p59, %p60
      %p62 = scmp.ne.s32.totalorder %s51, %s54
      %p63 = scmp.eq.s32.totalorder %s25, 1
      %p64 = por %p62, %p63
      %p65 = scmp.ne.s32.totalorder %s54, %s55
      %p66 = scmp.eq.s32.totalorder %s25, 0
      %p67 = por %p65, %p66
      %p68 = scmp.ne.s32.totalorder %s54, %s55
      %p69 = scmp.eq.s32.totalorder %s26, 1
      %p70 = por %p68, %p69
      %p72 = scmp.ne.s32.totalorder %s55, %s71
      %p73 = scmp.eq.s32.totalorder %s26, 0
      %p74 = por %p72, %p73
      %s76 = sadd.s32 %s75, 1
      %p79 = scmp.eq.s32.totalorder %s20, 1
      %p80 = scmp.ne.s32.totalorder %s75, %s77
      %p81 = scmp.eq.s32.totalorder %s20, 0
      %p82 = por %p80, %p81
      %p83 = scmp.ne.s32.totalorder %s75, %s77
      %p84 = scmp.eq.s32.totalorder %s25, 1
      %p85 = por %p83, %p84
      %p86 = scmp.ne.s32.totalorder %s77, %s78
      %p87 = scmp.eq.s32.totalorder %s25, 0
      %p88 = por %p86, %p87
      %p89 = scmp.ne.s32.totalorder %s77, %s78
      %p90 = scmp.eq.s32.totalorder %s26, 1
      %p91 = por %p89, %p90
      %p93 = scmp.ne.s32.totalorder %s78, %s92
      %p94 = scmp.eq.s32.totalorder %s26, 0
      %p95 = por %p93, %p94
      %s97 = sadd.s32 %s96, 1
      %p100 = scmp.eq.s32.totalorder %s20, 1
      %p101 = scmp.ne.s32.totalorder %s96, %s98
      %p102 = scmp.eq.s32.totalorder %s20, 0
      %p103 = por %p101, %p102
      %p104 = scmp.ne.s32.totalorder %s96, %s98
      %p105 = scmp.eq.s32.totalorder %s25, 1
      %p106 = por %p104, %p105
      %p107 = scmp.ne.s32.totalorder %s98, %s99
      %p108 = scmp.eq.s32.totalorder %s25, 0
      %p109 = por %p107, %p108
      %p110 = scmp.ne.s32.totalorder %s98, %s99
      %p111 = scmp.eq.s32.totalorder %s26, 1
      %p112 = por %p110, %p111
      %p114 = scmp.ne.s32.totalorder %s99, %s113
      %p115 = scmp.eq.s32.totalorder %s26, 0
      %p116 = por %p114, %p115
      %s118 = sadd.s32 %s117, 1
      %p121 = scmp.eq.s32.totalorder %s20, 1
      %p122 = scmp.ne.s32.totalorder %s117, %s119
      %p123 = scmp.eq.s32.totalorder %s20, 0
      %p124 = por %p122, %p123
      %p125 = scmp.ne.s32.totalorder %s117, %s119
      %p126 = scmp.eq.s32.totalorder %s25, 1
      %p127 = por %p125, %p126
      %p128 = scmp.ne.s32.totalorder %s119, %s120
      %p129 = scmp.eq.s32.totalorder %s25, 0
      %p130 = por %p128, %p129
      %p131 = scmp.ne.s32.totalorder %s119, %s120
      %p132 = scmp.eq.s32.totalorder %s26, 1
      %p133 = por %p131, %p132
      %p135 = scmp.ne.s32.totalorder %s120, %s134
      %p136 = scmp.eq.s32.totalorder %s26, 0
      %p137 = por %p135, %p136
      %s139 = sadd.s32 %s138, 1
      %p142 = scmp.eq.s32.totalorder %s20, 1
      %p143 = scmp.ne.s32.totalorder %s138, %s140
      %p144 = scmp.eq.s32.totalorder %s20, 0
      %p145 = por %p143, %p144
      %p146 = scmp.ne.s32.totalorder %s138, %s140
      %p147 = scmp.eq.s32.totalorder %s25, 1
      %p148 = por %p146, %p147
      %p149 = scmp.ne.s32.totalorder %s140, %s141
      %p150 = scmp.eq.s32.totalorder %s25, 0
      %p151 = por %p149, %p150
      %p152 = scmp.ne.s32.totalorder %s140, %s141
      %p153 = scmp.eq.s32.totalorder %s26, 1
      %p154 = por %p152, %p153
      %p156 = scmp.ne.s32.totalorder %s141, %s155
      %p157 = scmp.eq.s32.totalorder %s26, 0
      %p158 = por %p156, %p157
      %s159 = ssub.s32 %s20, %s27
      %p160 = scmp.eq.s32.totalorder %s159, 0
      %s162 = sadd.s32 %s161, 1
      %s163 = scalar_select %p160, %s161, %s162
      %p166 = pneg %p160
      %p167 = scmp.eq.s32.totalorder %s20, 1
      %p168 = por %p166, %p167
      %p169 = scmp.ne.s32.totalorder %s161, %s164
      %p170 = scmp.eq.s32.totalorder %s20, 0
      %p171 = por %p169, %p170
      %p172 = scmp.ne.s32.totalorder %s161, %s164
      %p173 = scmp.eq.s32.totalorder %s25, 1
      %p174 = por %p172, %p173
      %p175 = scmp.ne.s32.totalorder %s164, %s165
      %p176 = scmp.eq.s32.totalorder %s25, 0
      %p177 = por %p175, %p176
      %p178 = scmp.ne.s32.totalorder %s164, %s165
      %p179 = scmp.eq.s32.totalorder %s26, 1
      %p180 = por %p178, %p179
      %p182 = scmp.ne.s32.totalorder %s165, %s181
      %p183 = scmp.eq.s32.totalorder %s26, 0
      %p184 = por %p182, %p183
      %p185 = scmp.le.s32.totalorder 1, %s20
      %p186 = scmp.lt.s32.totalorder %s20, 3
      %p187 = pnand %p185, %p186
      %p188 = pneg %p187
      // Predicated region
      $region9: #{tpu_custom_call.1} parent=5 // pred_check
        _
      $region10: #{tpu_custom_call.1} parent=5 // pred_check_branch
        %190 = sbr.rel (%p187) target = $region12
      $region11: #{tpu_custom_call.1} parent=5 // pred_region
        %s191 = ssub.s32 %s20, 1
        // Predicated region
        $region13: #{tpu_custom_call.1} parent=11 // pred_check
          %p192 = pneg %p41
        $region14: #{tpu_custom_call.1} parent=11 // pred_check_branch
          %194 = sbr.rel (%p192) target = $region16
        $region15: #{tpu_custom_call.1} parent=11 // pred_region
          _
        $region16: #{tpu_custom_call.1} parent=11 // pred_fallthru
          _
        // Predicated region
        $region17: #{tpu_custom_call.1} parent=11 // pred_check
          %p195 = pneg %p88
        $region18: #{tpu_custom_call.1} parent=11 // pred_check_branch
          %197 = sbr.rel (%p195) target = $region20
        $region19: #{tpu_custom_call.1} parent=11 // pred_region
          _
        $region20: #{tpu_custom_call.1} parent=11 // pred_fallthru
          _
        // Predicated region
        $region21: #{tpu_custom_call.1} parent=11 // pred_check
          %p198 = pneg %p109
        $region22: #{tpu_custom_call.1} parent=11 // pred_check_branch
          %200 = sbr.rel (%p198) target = $region24
        $region23: #{tpu_custom_call.1} parent=11 // pred_region
          _
        $region24: #{tpu_custom_call.1} parent=11 // pred_fallthru
          _
        // Predicated region
        $region25: #{tpu_custom_call.1} parent=11 // pred_check
          %p201 = pneg %p130
        $region26: #{tpu_custom_call.1} parent=11 // pred_check_branch
          %203 = sbr.rel (%p201) target = $region28
        $region27: #{tpu_custom_call.1} parent=11 // pred_region
          %s205 = ssub.s32 8192, 8192
          %206 = vsyncadd [#allocation7], %s205
          %s207 = sshll.u32 [#allocation6], 4
          %s208 = int_to_ptr.vmem [resolvable:$true] %s207
          %213 = dma.hbm_to_vmem [thread:$0]  %s4, 8192, %s208, [#allocation7], 256, 256, 16
        $region28: #{tpu_custom_call.1} parent=11 // pred_fallthru
          _
        // Predicated region
        $region29: #{tpu_custom_call.1} parent=11 // pred_check
          %p214 = pneg %p151
        $region30: #{tpu_custom_call.1} parent=11 // pred_check_branch
          %216 = sbr.rel (%p214) target = $region32
        $region31: #{tpu_custom_call.1} parent=11 // pred_region
          _
        $region32: #{tpu_custom_call.1} parent=11 // pred_fallthru
          _
      $region12: #{tpu_custom_call.1} parent=5 // pred_fallthru
        _
      %p217 = scmp.lt.s32.totalorder %s20, 2
      // Predicated region
      $region33: #{tpu_custom_call.1} parent=5 // pred_check
        %p218 = pneg %p217
      $region34: #{tpu_custom_call.1} parent=5 // pred_check_branch
        %220 = sbr.rel (%p218) target = $region36
      $region35: #{tpu_custom_call.1} parent=5 // pred_region
        // Predicated region
        $region37: #{tpu_custom_call.1} parent=35 // pred_check
          %p221 = pneg %p61
        $region38: #{tpu_custom_call.1} parent=35 // pred_check_branch
          %223 = sbr.rel (%p221) target = $region40
        $region39: #{tpu_custom_call.1} parent=35 // pred_region
          %s224 = sand.u32 %s51, 1
          %s225 = scalar_lea.sflag [#allocation4], %s224
          %s226 = sand.u32 %s51, 1
          %s227 = smul.addr %s226, 16
          %s228 = scalar_lea.vmem [#allocation3], %s227
          %s230 = ssub.s32 256, 256
          %231 = vsyncadd %s225, %s230
          %s232 = smul.addr %s20, 2
          %s233 = smul.addr %s232, 128
          %s234 = scalar_lea.hbm %s1, %s233
          %s236 = sshll.u32 %s228, 4
          %s237 = int_to_ptr.vmem [resolvable:$true] %s236
          %239 = dma.hbm_to_vmem [thread:$0]  %s234, 256, %s237, %s225
        $region40: #{tpu_custom_call.1} parent=35 // pred_fallthru
          _
      $region36: #{tpu_custom_call.1} parent=5 // pred_fallthru
        _
      %p240 = scmp.le.s32.totalorder 1, %s20
      %p241 = scmp.lt.s32.totalorder %s20, 3
      %p242 = pnand %p240, %p241
      %p243 = pneg %p242
      // Predicated region
      $region41: #{tpu_custom_call.1} parent=5 // pred_check
        _
      $region42: #{tpu_custom_call.1} parent=5 // pred_check_branch
        %245 = sbr.rel (%p242) target = $region44
      $region43: #{tpu_custom_call.1} parent=5 // pred_region
        %s246 = ssub.s32 %s20, 1
        %s247 = sand.u32 %s54, 1
        %s248 = scalar_lea.sflag [#allocation4], %s247
        %s249 = sand.u32 %s54, 1
        %s250 = smul.addr %s249, 16
        %s251 = scalar_lea.vmem [#allocation3], %s250
        // Predicated region
        $region45: #{tpu_custom_call.1} parent=43 // pred_check
          %p252 = pneg %p67
        $region46: #{tpu_custom_call.1} parent=43 // pred_check_branch
          %254 = sbr.rel (%p252) target = $region48
        $region47: #{tpu_custom_call.1} parent=43 // pred_region
          %255 = dma.done %s248, 256
        $region48: #{tpu_custom_call.1} parent=43 // pred_fallthru
          _
        // Predicated region
        $region49: #{tpu_custom_call.1} parent=43 // pred_check
          %p256 = pneg %p130
        $region50: #{tpu_custom_call.1} parent=43 // pred_check_branch
          %258 = sbr.rel (%p256) target = $region52
        $region51: #{tpu_custom_call.1} parent=43 // pred_region
          %259 = dma.done [#allocation7], 8192
        $region52: #{tpu_custom_call.1} parent=43 // pred_fallthru
          _
        %p260 = pneg %p41
        %p261 = pneg %p38
        %s262 = sand.u32 %s54, 1
        %s263 = scalar_lea.sflag [#allocation4], %s262
        %s264 = sand.u32 %s54, 1
        %s265 = smul.addr %s264, 16
        %s266 = scalar_lea.vmem [#allocation3], %s265
        %p267 = pneg %p67
        %p268 = pneg %p64
        %p269 = pneg %p88
        %p270 = pneg %p85
        %p271 = pneg %p109
        %p272 = pneg %p106
        %p273 = pneg %p130
        %p274 = pneg %p127
        %p275 = pneg %p151
        %p276 = pneg %p148
        %p277 = pneg %p177
        %p278 = pneg %p174
        %s279 = sand.u32 %s164, 1
        %s280 = scalar_lea.sflag [#allocation5], %s279
        %s281 = sand.u32 %s164, 1
        %s282 = smul.addr %s281, 16
        %s283 = scalar_lea.vmem [#allocation8], %s282
        %v284 = vld [vmem:[%s251] sm:$0xff]
        %v285 = vld [vmem:[%s251 + $0x8] sm:$0xff]
        %v286 = vadd.f32 %v284, %v285
        %287 = vadd.xlane.f32.xlu0 %v286
        %v288 = vpop.xlane.xlu0 %287
        %v289 = vrcp.pop 256.0
        %v290 = vmul.f32 %v288, %v289
        %v291 = vsub.f32 %v284, %v290
        %v292 = vsub.f32 %v285, %v290
        %v293 = vmul.f32 %v291, %v291
        %v294 = vmul.f32 %v292, %v292
        %v295 = vadd.f32 %v293, %v294
        %296 = vadd.xlane.f32.xlu0 %v295
        %v297 = vpop.xlane.xlu0 %296
        %v298 = vmul.f32 %v297, %v289
        %v299 = vadd.f32 %v298, 1e-05
        %v300 = vrsqrt.pop %v299
        %v301 = vmul.f32 %v291, %v300
        %v302 = vmul.f32 %v292, %v300
        %v303 = vld [vmem:[%s2] sm:$0x3]
        %v305 = vlaneseq
        %v306 = vshrl.u32 %v305, 7
        %v307 = vsub.s32 0, %v306
        %v308 = vrot.slane %v303, %v307
        %v309 = vlaneseq
        %v310 = vshrl.u32 %v309, 7
        %v311 = vsub.s32 1, %v310
        %v312 = vrot.slane %v303, %v311
        %v315 = vmul.f32 %v301, %v308
        %v316 = vmul.f32 %v302, %v312
        %v317 = vld [vmem:[%s3] sm:$0x3]
        %v319 = vlaneseq
        %v320 = vshrl.u32 %v319, 7
        %v321 = vsub.s32 0, %v320
        %v322 = vrot.slane %v317, %v321
        %v323 = vlaneseq
        %v324 = vshrl.u32 %v323, 7
        %v325 = vsub.s32 1, %v324
        %v326 = vrot.slane %v317, %v325
        %v329 = vadd.f32 %v315, %v322
        %v330 = vadd.f32 %v316, %v326
        %v331 = vld [vmem:[#allocation6] sm:$0xff]
        %v332 = vld [vmem:[#allocation6 + $0x8] sm:$0xff]
        %v333 = vld [vmem:[#allocation6 + $0x10] sm:$0xff]
        %v334 = vld [vmem:[#allocation6 + $0x18] sm:$0xff]
        %v335 = vld [vmem:[#allocation6 + $0x20] sm:$0xff]
        %v336 = vld [vmem:[#allocation6 + $0x28] sm:$0xff]
        %v337 = vld [vmem:[#allocation6 + $0x30] sm:$0xff]
        %v338 = vld [vmem:[#allocation6 + $0x38] sm:$0xff]
        %v339 = vld [vmem:[#allocation6 + $0x40] sm:$0xff]
        %v340 = vld [vmem:[#allocation6 + $0x48] sm:$0xff]
        %v341 = vld [vmem:[#allocation6 + $0x50] sm:$0xff]
        %v342 = vld [vmem:[#allocation6 + $0x58] sm:$0xff]
        %v343 = vld [vmem:[#allocation6 + $0x60] sm:$0xff]
        %v344 = vld [vmem:[#allocation6 + $0x68] sm:$0xff]
        %v345 = vld [vmem:[#allocation6 + $0x70] sm:$0xff]
        %v346 = vld [vmem:[#allocation6 + $0x78] sm:$0xff]
        %v347 = vld [vmem:[#allocation6 + $0x80] sm:$0xff]
        %v348 = vld [vmem:[#allocation6 + $0x88] sm:$0xff]
        %v349 = vld [vmem:[#allocation6 + $0x90] sm:$0xff]
        %v350 = vld [vmem:[#allocation6 + $0x98] sm:$0xff]
        %v351 = vld [vmem:[#allocation6 + $0xa0] sm:$0xff]
        %v352 = vld [vmem:[#allocation6 + $0xa8] sm:$0xff]
        %v353 = vld [vmem:[#allocation6 + $0xb0] sm:$0xff]
        %v354 = vld [vmem:[#allocation6 + $0xb8] sm:$0xff]
        %v355 = vld [vmem:[#allocation6 + $0xc0] sm:$0xff]
        %v356 = vld [vmem:[#allocation6 + $0xc8] sm:$0xff]
        %v357 = vld [vmem:[#allocation6 + $0xd0] sm:$0xff]
        %v358 = vld [vmem:[#allocation6 + $0xd8] sm:$0xff]
        %v359 = vld [vmem:[#allocation6 + $0xe0] sm:$0xff]
        %v360 = vld [vmem:[#allocation6 + $0xe8] sm:$0xff]
        %v361 = vld [vmem:[#allocation6 + $0xf0] sm:$0xff]
        %v362 = vld [vmem:[#allocation6 + $0xf8] sm:$0xff]
        %v363 = vld [vmem:[#allocation6 + $0x100] sm:$0xff]
        %v364 = vld [vmem:[#allocation6 + $0x108] sm:$0xff]
        %v365 = vld [vmem:[#allocation6 + $0x110] sm:$0xff]
        %v366 = vld [vmem:[#allocation6 + $0x118] sm:$0xff]
        %v367 = vld [vmem:[#allocation6 + $0x120] sm:$0xff]
        %v368 = vld [vmem:[#allocation6 + $0x128] sm:$0xff]
        %v369 = vld [vmem:[#allocation6 + $0x130] sm:$0xff]
        %v370 = vld [vmem:[#allocation6 + $0x138] sm:$0xff]
        %v371 = vld [vmem:[#allocation6 + $0x140] sm:$0xff]
        %v372 = vld [vmem:[#allocation6 + $0x148] sm:$0xff]
        %v373 = vld [vmem:[#allocation6 + $0x150] sm:$0xff]
        %v374 = vld [vmem:[#allocation6 + $0x158] sm:$0xff]
        %v375 = vld [vmem:[#allocation6 + $0x160] sm:$0xff]
        %v376 = vld [vmem:[#allocation6 + $0x168] sm:$0xff]
        %v377 = vld [vmem:[#allocation6 + $0x170] sm:$0xff]
        %v378 = vld [vmem:[#allocation6 + $0x178] sm:$0xff]
        %v379 = vld [vmem:[#allocation6 + $0x180] sm:$0xff]
        %v380 = vld [vmem:[#allocation6 + $0x188] sm:$0xff]
        %v381 = vld [vmem:[#allocation6 + $0x190] sm:$0xff]
        %v382 = vld [vmem:[#allocation6 + $0x198] sm:$0xff]
        %v383 = vld [vmem:[#allocation6 + $0x1a0] sm:$0xff]
        %v384 = vld [vmem:[#allocation6 + $0x1a8] sm:$0xff]
        %v385 = vld [vmem:[#allocation6 + $0x1b0] sm:$0xff]
        %v386 = vld [vmem:[#allocation6 + $0x1b8] sm:$0xff]
        %v387 = vld [vmem:[#allocation6 + $0x1c0] sm:$0xff]
        %v388 = vld [vmem:[#allocation6 + $0x1c8] sm:$0xff]
        %v389 = vld [vmem:[#allocation6 + $0x1d0] sm:$0xff]
        %v390 = vld [vmem:[#allocation6 + $0x1d8] sm:$0xff]
        %v391 = vld [vmem:[#allocation6 + $0x1e0] sm:$0xff]
        %v392 = vld [vmem:[#allocation6 + $0x1e8] sm:$0xff]
        %v393 = vld [vmem:[#allocation6 + $0x1f0] sm:$0xff]
        %v394 = vld [vmem:[#allocation6 + $0x1f8] sm:$0xff]
        %v395 = vld [vmem:[%s5] sm:$0x3]
        %v397 = vlaneseq
        %v398 = vshrl.u32 %v397, 7
        %v399 = vsub.s32 0, %v398
        %v400 = vrot.slane %v395, %v399
        %v401 = vlaneseq
        %v402 = vshrl.u32 %v401, 7
        %v403 = vsub.s32 1, %v402
        %v404 = vrot.slane %v395, %v403
        %v407 = vand.u32 %v362, 4294901760
        %408 = vmatprep.subr.mxu0 %v407
        %v409 = vand.u32 %v361, 4294901760
        %410 = vmatpush1.msra.mxu0 %v409
        %v411 = vand.u32 %v360, 4294901760
        %412 = vmatprep.subr.mxu0 %v411
        %v413 = vand.u32 %v359, 4294901760
        %414 = vmatpush1.msra.mxu0 %v413
        %v415 = vand.u32 %v358, 4294901760
        %416 = vmatprep.subr.mxu0 %v415
        %v417 = vand.u32 %v357, 4294901760
        %418 = vmatpush1.msra.mxu0 %v417
        %v419 = vand.u32 %v356, 4294901760
        %420 = vmatprep.subr.mxu0 %v419
        %v421 = vand.u32 %v355, 4294901760
        %422 = vmatpush1.msra.mxu0 %v421
        %v423 = vand.u32 %v354, 4294901760
        %424 = vmatprep.subr.mxu0 %v423
        %v425 = vand.u32 %v353, 4294901760
        %426 = vmatpush1.msra.mxu0 %v425
        %v427 = vand.u32 %v352, 4294901760
        %428 = vmatprep.subr.mxu0 %v427
        %v429 = vand.u32 %v351, 4294901760
        %430 = vmatpush1.msra.mxu0 %v429
        %v431 = vand.u32 %v350, 4294901760
        %432 = vmatprep.subr.mxu0 %v431
        %v433 = vand.u32 %v349, 4294901760
        %434 = vmatpush1.msra.mxu0 %v433
        %v435 = vand.u32 %v348, 4294901760
        %436 = vmatprep.subr.mxu0 %v435
        %v437 = vand.u32 %v347, 4294901760
        %438 = vmatpush1.msra.mxu0 %v437
        %v439 = vand.u32 %v346, 4294901760
        %440 = vmatprep.subr.mxu0 %v439
        %v441 = vand.u32 %v345, 4294901760
        %442 = vmatpush1.msra.mxu0 %v441
        %v443 = vand.u32 %v344, 4294901760
        %444 = vmatprep.subr.mxu0 %v443
        %v445 = vand.u32 %v343, 4294901760
        %446 = vmatpush1.msra.mxu0 %v445
        %v447 = vand.u32 %v342, 4294901760
        %448 = vmatprep.subr.mxu0 %v447
        %v449 = vand.u32 %v341, 4294901760
        %450 = vmatpush1.msra.mxu0 %v449
        %v451 = vand.u32 %v340, 4294901760
        %452 = vmatprep.subr.mxu0 %v451
        %v453 = vand.u32 %v339, 4294901760
        %454 = vmatpush1.msra.mxu0 %v453
        %v455 = vand.u32 %v338, 4294901760
        %456 = vmatprep.subr.mxu0 %v455
        %v457 = vand.u32 %v337, 4294901760
        %458 = vmatpush1.msra.mxu0 %v457
        %v459 = vand.u32 %v336, 4294901760
        %460 = vmatprep.subr.mxu0 %v459
        %v461 = vand.u32 %v335, 4294901760
        %462 = vmatpush1.msra.mxu0 %v461
        %v463 = vand.u32 %v334, 4294901760
        %464 = vmatprep.subr.mxu0 %v463
        %v465 = vand.u32 %v333, 4294901760
        %466 = vmatpush1.msra.mxu0 %v465
        %v467 = vand.u32 %v332, 4294901760
        %468 = vmatprep.subr.mxu0 %v467
        %v469 = vand.u32 %v331, 4294901760
        %470 = vmatpush1.msra.mxu0 %v469
        %v471 = vand.u32 %v394, 4294901760
        %472 = vmatprep.subr.mxu0 %v471
        %v473 = vand.u32 %v393, 4294901760
        %474 = vmatpush2.msra.mxu0 %v473
        %v475 = vand.u32 %v392, 4294901760
        %476 = vmatprep.subr.mxu0 %v475
        %v477 = vand.u32 %v391, 4294901760
        %478 = vmatpush2.msra.mxu0 %v477
        %v479 = vand.u32 %v390, 4294901760
        %480 = vmatprep.subr.mxu0 %v479
        %v481 = vand.u32 %v389, 4294901760
        %482 = vmatpush2.msra.mxu0 %v481
        %v483 = vand.u32 %v388, 4294901760
        %484 = vmatprep.subr.mxu0 %v483
        %v485 = vand.u32 %v387, 4294901760
        %486 = vmatpush2.msra.mxu0 %v485
        %v487 = vand.u32 %v386, 4294901760
        %488 = vmatprep.subr.mxu0 %v487
        %v489 = vand.u32 %v385, 4294901760
        %490 = vmatpush2.msra.mxu0 %v489
        %v491 = vand.u32 %v384, 4294901760
        %492 = vmatprep.subr.mxu0 %v491
        %v493 = vand.u32 %v383, 4294901760
        %494 = vmatpush2.msra.mxu0 %v493
        %v495 = vand.u32 %v382, 4294901760
        %496 = vmatprep.subr.mxu0 %v495
        %v497 = vand.u32 %v381, 4294901760
        %498 = vmatpush2.msra.mxu0 %v497
        %v499 = vand.u32 %v380, 4294901760
        %500 = vmatprep.subr.mxu0 %v499
        %v501 = vand.u32 %v379, 4294901760
        %502 = vmatpush2.msra.mxu0 %v501
        %v503 = vand.u32 %v378, 4294901760
        %504 = vmatprep.subr.mxu0 %v503
        %v505 = vand.u32 %v377, 4294901760
        %506 = vmatpush2.msra.mxu0 %v505
        %v507 = vand.u32 %v376, 4294901760
        %508 = vmatprep.subr.mxu0 %v507
        %v509 = vand.u32 %v375, 4294901760
        %510 = vmatpush2.msra.mxu0 %v509
        %v511 = vand.u32 %v374, 4294901760
        %512 = vmatprep.subr.mxu0 %v511
        %v513 = vand.u32 %v373, 4294901760
        %514 = vmatpush2.msra.mxu0 %v513
        %v515 = vand.u32 %v372, 4294901760
        %516 = vmatprep.subr.mxu0 %v515
        %v517 = vand.u32 %v371, 4294901760
        %518 = vmatpush2.msra.mxu0 %v517
        %v519 = vand.u32 %v370, 4294901760
        %520 = vmatprep.subr.mxu0 %v519
        %v521 = vand.u32 %v369, 4294901760
        %522 = vmatpush2.msra.mxu0 %v521
        %v523 = vand.u32 %v368, 4294901760
        %524 = vmatprep.subr.mxu0 %v523
        %v525 = vand.u32 %v367, 4294901760
        %526 = vmatpush2.msra.mxu0 %v525
        %v527 = vand.u32 %v366, 4294901760
        %528 = vmatprep.subr.mxu0 %v527
        %v529 = vand.u32 %v365, 4294901760
        %530 = vmatpush2.msra.mxu0 %v529
        %v531 = vand.u32 %v364, 4294901760
        %532 = vmatprep.subr.mxu0 %v531
        %v533 = vand.u32 %v363, 4294901760
        %534 = vmatpush2.msra.mxu0 %v533
        %v535 = vand.u32 %v330, 4294901760
        %v536 = vsub.f32 %v330, %v535
        %v537 = vand.u32 %v536, 4294901760
        %v538 = vsub.f32 %v536, %v537
        %v539 = vand.u32 %v538, 4294901760
        %540 = vmatprep.mubr.f32.mxu0 %v539
        %v541 = vand.u32 %v329, 4294901760
        %v542 = vsub.f32 %v329, %v541
        %v543 = vand.u32 %v542, 4294901760
        %v544 = vsub.f32 %v542, %v543
        %v545 = vand.u32 %v544, 4294901760
        %546 = vmatmul.mubr.f32.gmra.mxu0 %v545
        %v547 = vpop.f32.mrf.mxu0
        %v548 = vadd.f32 %v400, %v547
        %v549 = vpop.f32.mrf.mxu0
        %v550 = vadd.f32 %v404, %v549
        %551 = vdwg.mxu0
        %v552 = vand.u32 %v362, 4294901760
        %v553 = vsub.f32 %v362, %v552
        %v554 = vand.u32 %v553, 4294901760
        %v555 = vsub.f32 %v553, %v554
        %v556 = vand.u32 %v555, 4294901760
        %557 = vmatprep.subr.mxu0 %v556
        %v558 = vand.u32 %v361, 4294901760
        %v559 = vsub.f32 %v361, %v558
        %v560 = vand.u32 %v559, 4294901760
        %v561 = vsub.f32 %v559, %v560
        %v562 = vand.u32 %v561, 4294901760
        %563 = vmatpush1.msra.mxu0 %v562
        %v564 = vand.u32 %v360, 4294901760
        %v565 = vsub.f32 %v360, %v564
        %v566 = vand.u32 %v565, 4294901760
        %v567 = vsub.f32 %v565, %v566
        %v568 = vand.u32 %v567, 4294901760
        %569 = vmatprep.subr.mxu0 %v568
        %v570 = vand.u32 %v359, 4294901760
        %v571 = vsub.f32 %v359, %v570
        %v572 = vand.u32 %v571, 4294901760
        %v573 = vsub.f32 %v571, %v572
        %v574 = vand.u32 %v573, 4294901760
        %575 = vmatpush1.msra.mxu0 %v574
        %v576 = vand.u32 %v358, 4294901760
        %v577 = vsub.f32 %v358, %v576
        %v578 = vand.u32 %v577, 4294901760
        %v579 = vsub.f32 %v577, %v578
        %v580 = vand.u32 %v579, 4294901760
        %581 = vmatprep.subr.mxu0 %v580
        %v582 = vand.u32 %v357, 4294901760
        %v583 = vsub.f32 %v357, %v582
        %v584 = vand.u32 %v583, 4294901760
        %v585 = vsub.f32 %v583, %v584
        %v586 = vand.u32 %v585, 4294901760
        %587 = vmatpush1.msra.mxu0 %v586
        %v588 = vand.u32 %v356, 4294901760
        %v589 = vsub.f32 %v356, %v588
        %v590 = vand.u32 %v589, 4294901760
        %v591 = vsub.f32 %v589, %v590
        %v592 = vand.u32 %v591, 4294901760
        %593 = vmatprep.subr.mxu0 %v592
        %v594 = vand.u32 %v355, 4294901760
        %v595 = vsub.f32 %v355, %v594
        %v596 = vand.u32 %v595, 4294901760
        %v597 = vsub.f32 %v595, %v596
        %v598 = vand.u32 %v597, 4294901760
        %599 = vmatpush1.msra.mxu0 %v598
        %v600 = vand.u32 %v354, 4294901760
        %v601 = vsub.f32 %v354, %v600
        %v602 = vand.u32 %v601, 4294901760
        %v603 = vsub.f32 %v601, %v602
        %v604 = vand.u32 %v603, 4294901760
        %605 = vmatprep.subr.mxu0 %v604
        %v606 = vand.u32 %v353, 4294901760
        %v607 = vsub.f32 %v353, %v606
        %v608 = vand.u32 %v607, 4294901760
        %v609 = vsub.f32 %v607, %v608
        %v610 = vand.u32 %v609, 4294901760
        %611 = vmatpush1.msra.mxu0 %v610
        %v612 = vand.u32 %v352, 4294901760
        %v613 = vsub.f32 %v352, %v612
        %v614 = vand.u32 %v613, 4294901760
        %v615 = vsub.f32 %v613, %v614
        %v616 = vand.u32 %v615, 4294901760
        %617 = vmatprep.subr.mxu0 %v616
        %v618 = vand.u32 %v351, 4294901760
        %v619 = vsub.f32 %v351, %v618
        %v620 = vand.u32 %v619, 4294901760
        %v621 = vsub.f32 %v619, %v620
        %v622 = vand.u32 %v621, 4294901760
        %623 = vmatpush1.msra.mxu0 %v622
        %v624 = vand.u32 %v350, 4294901760
        %v625 = vsub.f32 %v350, %v624
        %v626 = vand.u32 %v625, 4294901760
        %v627 = vsub.f32 %v625, %v626
        %v628 = vand.u32 %v627, 4294901760
        %629 = vmatprep.subr.mxu0 %v628
        %v630 = vand.u32 %v349, 4294901760
        %v631 = vsub.f32 %v349, %v630
        %v632 = vand.u32 %v631, 4294901760
        %v633 = vsub.f32 %v631, %v632
        %v634 = vand.u32 %v633, 4294901760
        %635 = vmatpush1.msra.mxu0 %v634
        %v636 = vand.u32 %v348, 4294901760
        %v637 = vsub.f32 %v348, %v636
        %v638 = vand.u32 %v637, 4294901760
        %v639 = vsub.f32 %v637, %v638
        %v640 = vand.u32 %v639, 4294901760
        %641 = vmatprep.subr.mxu0 %v640
        %v642 = vand.u32 %v347, 4294901760
        %v643 = vsub.f32 %v347, %v642
        %v644 = vand.u32 %v643, 4294901760
        %v645 = vsub.f32 %v643, %v644
        %v646 = vand.u32 %v645, 4294901760
        %647 = vmatpush1.msra.mxu0 %v646
        %v648 = vand.u32 %v346, 4294901760
        %v649 = vsub.f32 %v346, %v648
        %v650 = vand.u32 %v649, 4294901760
        %v651 = vsub.f32 %v649, %v650
        %v652 = vand.u32 %v651, 4294901760
        %653 = vmatprep.subr.mxu0 %v652
        %v654 = vand.u32 %v345, 4294901760
        %v655 = vsub.f32 %v345, %v654
        %v656 = vand.u32 %v655, 4294901760
        %v657 = vsub.f32 %v655, %v656
        %v658 = vand.u32 %v657, 4294901760
        %659 = vmatpush1.msra.mxu0 %v658
        %v660 = vand.u32 %v344, 4294901760
        %v661 = vsub.f32 %v344, %v660
        %v662 = vand.u32 %v661, 4294901760
        %v663 = vsub.f32 %v661, %v662
        %v664 = vand.u32 %v663, 4294901760
        %665 = vmatprep.subr.mxu0 %v664
        %v666 = vand.u32 %v343, 4294901760
        %v667 = vsub.f32 %v343, %v666
        %v668 = vand.u32 %v667, 4294901760
        %v669 = vsub.f32 %v667, %v668
        %v670 = vand.u32 %v669, 4294901760
        %671 = vmatpush1.msra.mxu0 %v670
        %v672 = vand.u32 %v342, 4294901760
        %v673 = vsub.f32 %v342, %v672
        %v674 = vand.u32 %v673, 4294901760
        %v675 = vsub.f32 %v673, %v674
        %v676 = vand.u32 %v675, 4294901760
        %677 = vmatprep.subr.mxu0 %v676
        %v678 = vand.u32 %v341, 4294901760
        %v679 = vsub.f32 %v341, %v678
        %v680 = vand.u32 %v679, 4294901760
        %v681 = vsub.f32 %v679, %v680
        %v682 = vand.u32 %v681, 4294901760
        %683 = vmatpush1.msra.mxu0 %v682
        %v684 = vand.u32 %v340, 4294901760
        %v685 = vsub.f32 %v340, %v684
        %v686 = vand.u32 %v685, 4294901760
        %v687 = vsub.f32 %v685, %v686
        %v688 = vand.u32 %v687, 4294901760
        %689 = vmatprep.subr.mxu0 %v688
        %v690 = vand.u32 %v339, 4294901760
        %v691 = vsub.f32 %v339, %v690
        %v692 = vand.u32 %v691, 4294901760
        %v693 = vsub.f32 %v691, %v692
        %v694 = vand.u32 %v693, 4294901760
        %695 = vmatpush1.msra.mxu0 %v694
        %v696 = vand.u32 %v338, 4294901760
        %v697 = vsub.f32 %v338, %v696
        %v698 = vand.u32 %v697, 4294901760
        %v699 = vsub.f32 %v697, %v698
        %v700 = vand.u32 %v699, 4294901760
        %701 = vmatprep.subr.mxu0 %v700
        %v702 = vand.u32 %v337, 4294901760
        %v703 = vsub.f32 %v337, %v702
        %v704 = vand.u32 %v703, 4294901760
        %v705 = vsub.f32 %v703, %v704
        %v706 = vand.u32 %v705, 4294901760
        %707 = vmatpush1.msra.mxu0 %v706
        %v708 = vand.u32 %v336, 4294901760
        %v709 = vsub.f32 %v336, %v708
        %v710 = vand.u32 %v709, 4294901760
        %v711 = vsub.f32 %v709, %v710
        %v712 = vand.u32 %v711, 4294901760
        %713 = vmatprep.subr.mxu0 %v712
        %v714 = vand.u32 %v335, 4294901760
        %v715 = vsub.f32 %v335, %v714
        %v716 = vand.u32 %v715, 4294901760
        %v717 = vsub.f32 %v715, %v716
        %v718 = vand.u32 %v717, 4294901760
        %719 = vmatpush1.msra.mxu0 %v718
        %v720 = vand.u32 %v334, 4294901760
        %v721 = vsub.f32 %v334, %v720
        %v722 = vand.u32 %v721, 4294901760
        %v723 = vsub.f32 %v721, %v722
        %v724 = vand.u32 %v723, 4294901760
        %725 = vmatprep.subr.mxu0 %v724
        %v726 = vand.u32 %v333, 4294901760
        %v727 = vsub.f32 %v333, %v726
        %v728 = vand.u32 %v727, 4294901760
        %v729 = vsub.f32 %v727, %v728
        %v730 = vand.u32 %v729, 4294901760
        %731 = vmatpush1.msra.mxu0 %v730
        %v732 = vand.u32 %v332, 4294901760
        %v733 = vsub.f32 %v332, %v732
        %v734 = vand.u32 %v733, 4294901760
        %v735 = vsub.f32 %v733, %v734
        %v736 = vand.u32 %v735, 4294901760
        %737 = vmatprep.subr.mxu0 %v736
        %v738 = vand.u32 %v331, 4294901760
        %v739 = vsub.f32 %v331, %v738
        %v740 = vand.u32 %v739, 4294901760
        %v741 = vsub.f32 %v739, %v740
        %v742 = vand.u32 %v741, 4294901760
        %743 = vmatpush1.msra.mxu0 %v742
        %v744 = vand.u32 %v394, 4294901760
        %v745 = vsub.f32 %v394, %v744
        %v746 = vand.u32 %v745, 4294901760
        %v747 = vsub.f32 %v745, %v746
        %v748 = vand.u32 %v747, 4294901760
        %749 = vmatprep.subr.mxu0 %v748
        %v750 = vand.u32 %v393, 4294901760
        %v751 = vsub.f32 %v393, %v750
        %v752 = vand.u32 %v751, 4294901760
        %v753 = vsub.f32 %v751, %v752
        %v754 = vand.u32 %v753, 4294901760
        %755 = vmatpush2.msra.mxu0 %v754
        %v756 = vand.u32 %v392, 4294901760
        %v757 = vsub.f32 %v392, %v756
        %v758 = vand.u32 %v757, 4294901760
        %v759 = vsub.f32 %v757, %v758
        %v760 = vand.u32 %v759, 4294901760
        %761 = vmatprep.subr.mxu0 %v760
        %v762 = vand.u32 %v391, 4294901760
        %v763 = vsub.f32 %v391, %v762
        %v764 = vand.u32 %v763, 4294901760
        %v765 = vsub.f32 %v763, %v764
        %v766 = vand.u32 %v765, 4294901760
        %767 = vmatpush2.msra.mxu0 %v766
        %v768 = vand.u32 %v390, 4294901760
        %v769 = vsub.f32 %v390, %v768
        %v770 = vand.u32 %v769, 4294901760
        %v771 = vsub.f32 %v769, %v770
        %v772 = vand.u32 %v771, 4294901760
        %773 = vmatprep.subr.mxu0 %v772
        %v774 = vand.u32 %v389, 4294901760
        %v775 = vsub.f32 %v389, %v774
        %v776 = vand.u32 %v775, 4294901760
        %v777 = vsub.f32 %v775, %v776
        %v778 = vand.u32 %v777, 4294901760
        %779 = vmatpush2.msra.mxu0 %v778
        %v780 = vand.u32 %v388, 4294901760
        %v781 = vsub.f32 %v388, %v780
        %v782 = vand.u32 %v781, 4294901760
        %v783 = vsub.f32 %v781, %v782
        %v784 = vand.u32 %v783, 4294901760
        %785 = vmatprep.subr.mxu0 %v784
        %v786 = vand.u32 %v387, 4294901760
        %v787 = vsub.f32 %v387, %v786
        %v788 = vand.u32 %v787, 4294901760
        %v789 = vsub.f32 %v787, %v788
        %v790 = vand.u32 %v789, 4294901760
        %791 = vmatpush2.msra.mxu0 %v790
        %v792 = vand.u32 %v386, 4294901760
        %v793 = vsub.f32 %v386, %v792
        %v794 = vand.u32 %v793, 4294901760
        %v795 = vsub.f32 %v793, %v794
        %v796 = vand.u32 %v795, 4294901760
        %797 = vmatprep.subr.mxu0 %v796
        %v798 = vand.u32 %v385, 4294901760
        %v799 = vsub.f32 %v385, %v798
        %v800 = vand.u32 %v799, 4294901760
        %v801 = vsub.f32 %v799, %v800
        %v802 = vand.u32 %v801, 4294901760
        %803 = vmatpush2.msra.mxu0 %v802
        %v804 = vand.u32 %v384, 4294901760
        %v805 = vsub.f32 %v384, %v804
        %v806 = vand.u32 %v805, 4294901760
        %v807 = vsub.f32 %v805, %v806
        %v808 = vand.u32 %v807, 4294901760
        %809 = vmatprep.subr.mxu0 %v808
        %v810 = vand.u32 %v383, 4294901760
        %v811 = vsub.f32 %v383, %v810
        %v812 = vand.u32 %v811, 4294901760
        %v813 = vsub.f32 %v811, %v812
        %v814 = vand.u32 %v813, 4294901760
        %815 = vmatpush2.msra.mxu0 %v814
        %v816 = vand.u32 %v382, 4294901760
        %v817 = vsub.f32 %v382, %v816
        %v818 = vand.u32 %v817, 4294901760
        %v819 = vsub.f32 %v817, %v818
        %v820 = vand.u32 %v819, 4294901760
        %821 = vmatprep.subr.mxu0 %v820
        %v822 = vand.u32 %v381, 4294901760
        %v823 = vsub.f32 %v381, %v822
        %v824 = vand.u32 %v823, 4294901760
        %v825 = vsub.f32 %v823, %v824
        %v826 = vand.u32 %v825, 4294901760
        %827 = vmatpush2.msra.mxu0 %v826
        %v828 = vand.u32 %v380, 4294901760
        %v829 = vsub.f32 %v380, %v828
        %v830 = vand.u32 %v829, 4294901760
        %v831 = vsub.f32 %v829, %v830
        %v832 = vand.u32 %v831, 4294901760
        %833 = vmatprep.subr.mxu0 %v832
        %v834 = vand.u32 %v379, 4294901760
        %v835 = vsub.f32 %v379, %v834
        %v836 = vand.u32 %v835, 4294901760
        %v837 = vsub.f32 %v835, %v836
        %v838 = vand.u32 %v837, 4294901760
        %839 = vmatpush2.msra.mxu0 %v838
        %v840 = vand.u32 %v378, 4294901760
        %v841 = vsub.f32 %v378, %v840
        %v842 = vand.u32 %v841, 4294901760
        %v843 = vsub.f32 %v841, %v842
        %v844 = vand.u32 %v843, 4294901760
        %845 = vmatprep.subr.mxu0 %v844
        %v846 = vand.u32 %v377, 4294901760
        %v847 = vsub.f32 %v377, %v846
        %v848 = vand.u32 %v847, 4294901760
        %v849 = vsub.f32 %v847, %v848
        %v850 = vand.u32 %v849, 4294901760
        %851 = vmatpush2.msra.mxu0 %v850
        %v852 = vand.u32 %v376, 4294901760
        %v853 = vsub.f32 %v376, %v852
        %v854 = vand.u32 %v853, 4294901760
        %v855 = vsub.f32 %v853, %v854
        %v856 = vand.u32 %v855, 4294901760
        %857 = vmatprep.subr.mxu0 %v856
        %v858 = vand.u32 %v375, 4294901760
        %v859 = vsub.f32 %v375, %v858
        %v860 = vand.u32 %v859, 4294901760
        %v861 = vsub.f32 %v859, %v860
        %v862 = vand.u32 %v861, 4294901760
        %863 = vmatpush2.msra.mxu0 %v862
        %v864 = vand.u32 %v374, 4294901760
        %v865 = vsub.f32 %v374, %v864
        %v866 = vand.u32 %v865, 4294901760
        %v867 = vsub.f32 %v865, %v866
        %v868 = vand.u32 %v867, 4294901760
        %869 = vmatprep.subr.mxu0 %v868
        %v870 = vand.u32 %v373, 4294901760
        %v871 = vsub.f32 %v373, %v870
        %v872 = vand.u32 %v871, 4294901760
        %v873 = vsub.f32 %v871, %v872
        %v874 = vand.u32 %v873, 4294901760
        %875 = vmatpush2.msra.mxu0 %v874
        %v876 = vand.u32 %v372, 4294901760
        %v877 = vsub.f32 %v372, %v876
        %v878 = vand.u32 %v877, 4294901760
        %v879 = vsub.f32 %v877, %v878
        %v880 = vand.u32 %v879, 4294901760
        %881 = vmatprep.subr.mxu0 %v880
        %v882 = vand.u32 %v371, 4294901760
        %v883 = vsub.f32 %v371, %v882
        %v884 = vand.u32 %v883, 4294901760
        %v885 = vsub.f32 %v883, %v884
        %v886 = vand.u32 %v885, 4294901760
        %887 = vmatpush2.msra.mxu0 %v886
        %v888 = vand.u32 %v370, 4294901760
        %v889 = vsub.f32 %v370, %v888
        %v890 = vand.u32 %v889, 4294901760
        %v891 = vsub.f32 %v889, %v890
        %v892 = vand.u32 %v891, 4294901760
        %893 = vmatprep.subr.mxu0 %v892
        %v894 = vand.u32 %v369, 4294901760
        %v895 = vsub.f32 %v369, %v894
        %v896 = vand.u32 %v895, 4294901760
        %v897 = vsub.f32 %v895, %v896
        %v898 = vand.u32 %v897, 4294901760
        %899 = vmatpush2.msra.mxu0 %v898
        %v900 = vand.u32 %v368, 4294901760
        %v901 = vsub.f32 %v368, %v900
        %v902 = vand.u32 %v901, 4294901760
        %v903 = vsub.f32 %v901, %v902
        %v904 = vand.u32 %v903, 4294901760
        %905 = vmatprep.subr.mxu0 %v904
        %v906 = vand.u32 %v367, 4294901760
        %v907 = vsub.f32 %v367, %v906
        %v908 = vand.u32 %v907, 4294901760
        %v909 = vsub.f32 %v907, %v908
        %v910 = vand.u32 %v909, 4294901760
        %911 = vmatpush2.msra.mxu0 %v910
        %v912 = vand.u32 %v366, 4294901760
        %v913 = vsub.f32 %v366, %v912
        %v914 = vand.u32 %v913, 4294901760
        %v915 = vsub.f32 %v913, %v914
        %v916 = vand.u32 %v915, 4294901760
        %917 = vmatprep.subr.mxu0 %v916
        %v918 = vand.u32 %v365, 4294901760
        %v919 = vsub.f32 %v365, %v918
        %v920 = vand.u32 %v919, 4294901760
        %v921 = vsub.f32 %v919, %v920
        %v922 = vand.u32 %v921, 4294901760
        %923 = vmatpush2.msra.mxu0 %v922
        %v924 = vand.u32 %v364, 4294901760
        %v925 = vsub.f32 %v364, %v924
        %v926 = vand.u32 %v925, 4294901760
        %v927 = vsub.f32 %v925, %v926
        %v928 = vand.u32 %v927, 4294901760
        %929 = vmatprep.subr.mxu0 %v928
        %v930 = vand.u32 %v363, 4294901760
        %v931 = vsub.f32 %v363, %v930
        %v932 = vand.u32 %v931, 4294901760
        %v933 = vsub.f32 %v931, %v932
        %v934 = vand.u32 %v933, 4294901760
        %935 = vmatpush2.msra.mxu0 %v934
        %v936 = vand.u32 %v330, 4294901760
        %937 = vmatprep.mubr.f32.mxu0 %v936
        %v938 = vand.u32 %v329, 4294901760
        %939 = vmatmul.mubr.f32.gmra.mxu0 %v938
        %v940 = vpop.f32.mrf.mxu0
        %v941 = vadd.f32 %v548, %v940
        %v942 = vpop.f32.mrf.mxu0
        %v943 = vadd.f32 %v550, %v942
        %944 = vdwg.mxu0
        %v945 = vand.u32 %v362, 4294901760
        %v946 = vsub.f32 %v362, %v945
        %947 = vmatprep.subr.mxu0 %v946
        %v948 = vand.u32 %v361, 4294901760
        %v949 = vsub.f32 %v361, %v948
        %950 = vmatpush1.msra.mxu0 %v949
        %v951 = vand.u32 %v360, 4294901760
        %v952 = vsub.f32 %v360, %v951
        %953 = vmatprep.subr.mxu0 %v952
        %v954 = vand.u32 %v359, 4294901760
        %v955 = vsub.f32 %v359, %v954
        %956 = vmatpush1.msra.mxu0 %v955
        %v957 = vand.u32 %v358, 4294901760
        %v958 = vsub.f32 %v358, %v957
        %959 = vmatprep.subr.mxu0 %v958
        %v960 = vand.u32 %v357, 4294901760
        %v961 = vsub.f32 %v357, %v960
        %962 = vmatpush1.msra.mxu0 %v961
        %v963 = vand.u32 %v356, 4294901760
        %v964 = vsub.f32 %v356, %v963
        %965 = vmatprep.subr.mxu0 %v964
        %v966 = vand.u32 %v355, 4294901760
        %v967 = vsub.f32 %v355, %v966
        %968 = vmatpush1.msra.mxu0 %v967
        %v969 = vand.u32 %v354, 4294901760
        %v970 = vsub.f32 %v354, %v969
        %971 = vmatprep.subr.mxu0 %v970
        %v972 = vand.u32 %v353, 4294901760
        %v973 = vsub.f32 %v353, %v972
        %974 = vmatpush1.msra.mxu0 %v973
        %v975 = vand.u32 %v352, 4294901760
        %v976 = vsub.f32 %v352, %v975
        %977 = vmatprep.subr.mxu0 %v976
        %v978 = vand.u32 %v351, 4294901760
        %v979 = vsub.f32 %v351, %v978
        %980 = vmatpush1.msra.mxu0 %v979
        %v981 = vand.u32 %v350, 4294901760
        %v982 = vsub.f32 %v350, %v981
        %983 = vmatprep.subr.mxu0 %v982
        %v984 = vand.u32 %v349, 4294901760
        %v985 = vsub.f32 %v349, %v984
        %986 = vmatpush1.msra.mxu0 %v985
        %v987 = vand.u32 %v348, 4294901760
        %v988 = vsub.f32 %v348, %v987
        %989 = vmatprep.subr.mxu0 %v988
        %v990 = vand.u32 %v347, 4294901760
        %v991 = vsub.f32 %v347, %v990
        %992 = vmatpush1.msra.mxu0 %v991
        %v993 = vand.u32 %v346, 4294901760
        %v994 = vsub.f32 %v346, %v993
        %995 = vmatprep.subr.mxu0 %v994
        %v996 = vand.u32 %v345, 4294901760
        %v997 = vsub.f32 %v345, %v996
        %998 = vmatpush1.msra.mxu0 %v997
        %v999 = vand.u32 %v344, 4294901760
        %v1000 = vsub.f32 %v344, %v999
        %1001 = vmatprep.subr.mxu0 %v1000
        %v1002 = vand.u32 %v343, 4294901760
        %v1003 = vsub.f32 %v343, %v1002
        %1004 = vmatpush1.msra.mxu0 %v1003
        %v1005 = vand.u32 %v342, 4294901760
        %v1006 = vsub.f32 %v342, %v1005
        %1007 = vmatprep.subr.mxu0 %v1006
        %v1008 = vand.u32 %v341, 4294901760
        %v1009 = vsub.f32 %v341, %v1008
        %1010 = vmatpush1.msra.mxu0 %v1009
        %v1011 = vand.u32 %v340, 4294901760
        %v1012 = vsub.f32 %v340, %v1011
        %1013 = vmatprep.subr.mxu0 %v1012
        %v1014 = vand.u32 %v339, 4294901760
        %v1015 = vsub.f32 %v339, %v1014
        %1016 = vmatpush1.msra.mxu0 %v1015
        %v1017 = vand.u32 %v338, 4294901760
        %v1018 = vsub.f32 %v338, %v1017
        %1019 = vmatprep.subr.mxu0 %v1018
        %v1020 = vand.u32 %v337, 4294901760
        %v1021 = vsub.f32 %v337, %v1020
        %1022 = vmatpush1.msra.mxu0 %v1021
        %v1023 = vand.u32 %v336, 4294901760
        %v1024 = vsub.f32 %v336, %v1023
        %1025 = vmatprep.subr.mxu0 %v1024
        %v1026 = vand.u32 %v335, 4294901760
        %v1027 = vsub.f32 %v335, %v1026
        %1028 = vmatpush1.msra.mxu0 %v1027
        %v1029 = vand.u32 %v334, 4294901760
        %v1030 = vsub.f32 %v334, %v1029
        %1031 = vmatprep.subr.mxu0 %v1030
        %v1032 = vand.u32 %v333, 4294901760
        %v1033 = vsub.f32 %v333, %v1032
        %1034 = vmatpush1.msra.mxu0 %v1033
        %v1035 = vand.u32 %v332, 4294901760
        %v1036 = vsub.f32 %v332, %v1035
        %1037 = vmatprep.subr.mxu0 %v1036
        %v1038 = vand.u32 %v331, 4294901760
        %v1039 = vsub.f32 %v331, %v1038
        %1040 = vmatpush1.msra.mxu0 %v1039
        %v1041 = vand.u32 %v394, 4294901760
        %v1042 = vsub.f32 %v394, %v1041
        %1043 = vmatprep.subr.mxu0 %v1042
        %v1044 = vand.u32 %v393, 4294901760
        %v1045 = vsub.f32 %v393, %v1044
        %1046 = vmatpush2.msra.mxu0 %v1045
        %v1047 = vand.u32 %v392, 4294901760
        %v1048 = vsub.f32 %v392, %v1047
        %1049 = vmatprep.subr.mxu0 %v1048
        %v1050 = vand.u32 %v391, 4294901760
        %v1051 = vsub.f32 %v391, %v1050
        %1052 = vmatpush2.msra.mxu0 %v1051
        %v1053 = vand.u32 %v390, 4294901760
        %v1054 = vsub.f32 %v390, %v1053
        %1055 = vmatprep.subr.mxu0 %v1054
        %v1056 = vand.u32 %v389, 4294901760
        %v1057 = vsub.f32 %v389, %v1056
        %1058 = vmatpush2.msra.mxu0 %v1057
        %v1059 = vand.u32 %v388, 4294901760
        %v1060 = vsub.f32 %v388, %v1059
        %1061 = vmatprep.subr.mxu0 %v1060
        %v1062 = vand.u32 %v387, 4294901760
        %v1063 = vsub.f32 %v387, %v1062
        %1064 = vmatpush2.msra.mxu0 %v1063
        %v1065 = vand.u32 %v386, 4294901760
        %v1066 = vsub.f32 %v386, %v1065
        %1067 = vmatprep.subr.mxu0 %v1066
        %v1068 = vand.u32 %v385, 4294901760
        %v1069 = vsub.f32 %v385, %v1068
        %1070 = vmatpush2.msra.mxu0 %v1069
        %v1071 = vand.u32 %v384, 4294901760
        %v1072 = vsub.f32 %v384, %v1071
        %1073 = vmatprep.subr.mxu0 %v1072
        %v1074 = vand.u32 %v383, 4294901760
        %v1075 = vsub.f32 %v383, %v1074
        %1076 = vmatpush2.msra.mxu0 %v1075
        %v1077 = vand.u32 %v382, 4294901760
        %v1078 = vsub.f32 %v382, %v1077
        %1079 = vmatprep.subr.mxu0 %v1078
        %v1080 = vand.u32 %v381, 4294901760
        %v1081 = vsub.f32 %v381, %v1080
        %1082 = vmatpush2.msra.mxu0 %v1081
        %v1083 = vand.u32 %v380, 4294901760
        %v1084 = vsub.f32 %v380, %v1083
        %1085 = vmatprep.subr.mxu0 %v1084
        %v1086 = vand.u32 %v379, 4294901760
        %v1087 = vsub.f32 %v379, %v1086
        %1088 = vmatpush2.msra.mxu0 %v1087
        %v1089 = vand.u32 %v378, 4294901760
        %v1090 = vsub.f32 %v378, %v1089
        %1091 = vmatprep.subr.mxu0 %v1090
        %v1092 = vand.u32 %v377, 4294901760
        %v1093 = vsub.f32 %v377, %v1092
        %1094 = vmatpush2.msra.mxu0 %v1093
        %v1095 = vand.u32 %v376, 4294901760
        %v1096 = vsub.f32 %v376, %v1095
        %1097 = vmatprep.subr.mxu0 %v1096
        %v1098 = vand.u32 %v375, 4294901760
        %v1099 = vsub.f32 %v375, %v1098
        %1100 = vmatpush2.msra.mxu0 %v1099
        %v1101 = vand.u32 %v374, 4294901760
        %v1102 = vsub.f32 %v374, %v1101
        %1103 = vmatprep.subr.mxu0 %v1102
        %v1104 = vand.u32 %v373, 4294901760
        %v1105 = vsub.f32 %v373, %v1104
        %1106 = vmatpush2.msra.mxu0 %v1105
        %v1107 = vand.u32 %v372, 4294901760
        %v1108 = vsub.f32 %v372, %v1107
        %1109 = vmatprep.subr.mxu0 %v1108
        %v1110 = vand.u32 %v371, 4294901760
        %v1111 = vsub.f32 %v371, %v1110
        %1112 = vmatpush2.msra.mxu0 %v1111
        %v1113 = vand.u32 %v370, 4294901760
        %v1114 = vsub.f32 %v370, %v1113
        %1115 = vmatprep.subr.mxu0 %v1114
        %v1116 = vand.u32 %v369, 4294901760
        %v1117 = vsub.f32 %v369, %v1116
        %1118 = vmatpush2.msra.mxu0 %v1117
        %v1119 = vand.u32 %v368, 4294901760
        %v1120 = vsub.f32 %v368, %v1119
        %1121 = vmatprep.subr.mxu0 %v1120
        %v1122 = vand.u32 %v367, 4294901760
        %v1123 = vsub.f32 %v367, %v1122
        %1124 = vmatpush2.msra.mxu0 %v1123
        %v1125 = vand.u32 %v366, 4294901760
        %v1126 = vsub.f32 %v366, %v1125
        %1127 = vmatprep.subr.mxu0 %v1126
        %v1128 = vand.u32 %v365, 4294901760
        %v1129 = vsub.f32 %v365, %v1128
        %1130 = vmatpush2.msra.mxu0 %v1129
        %v1131 = vand.u32 %v364, 4294901760
        %v1132 = vsub.f32 %v364, %v1131
        %1133 = vmatprep.subr.mxu0 %v1132
        %v1134 = vand.u32 %v363, 4294901760
        %v1135 = vsub.f32 %v363, %v1134
        %1136 = vmatpush2.msra.mxu0 %v1135
        %v1137 = vand.u32 %v330, 4294901760
        %v1138 = vsub.f32 %v330, %v1137
        %1139 = vmatprep.mubr.f32.mxu0 %v1138
        %v1140 = vand.u32 %v329, 4294901760
        %v1141 = vsub.f32 %v329, %v1140
        %1142 = vmatmul.mubr.f32.gmra.mxu0 %v1141
        %v1143 = vpop.f32.mrf.mxu0
        %v1144 = vadd.f32 %v941, %v1143
        %v1145 = vpop.f32.mrf.mxu0
        %v1146 = vadd.f32 %v943, %v1145
        %1147 = vdwg.mxu0
        %v1148 = vand.u32 %v362, 4294901760
        %1149 = vmatprep.subr.mxu0 %v1148
        %v1150 = vand.u32 %v361, 4294901760
        %1151 = vmatpush1.msra.mxu0 %v1150
        %v1152 = vand.u32 %v360, 4294901760
        %1153 = vmatprep.subr.mxu0 %v1152
        %v1154 = vand.u32 %v359, 4294901760
        %1155 = vmatpush1.msra.mxu0 %v1154
        %v1156 = vand.u32 %v358, 4294901760
        %1157 = vmatprep.subr.mxu0 %v1156
        %v1158 = vand.u32 %v357, 4294901760
        %1159 = vmatpush1.msra.mxu0 %v1158
        %v1160 = vand.u32 %v356, 4294901760
        %1161 = vmatprep.subr.mxu0 %v1160
        %v1162 = vand.u32 %v355, 4294901760
        %1163 = vmatpush1.msra.mxu0 %v1162
        %v1164 = vand.u32 %v354, 4294901760
        %1165 = vmatprep.subr.mxu0 %v1164
        %v1166 = vand.u32 %v353, 4294901760
        %1167 = vmatpush1.msra.mxu0 %v1166
        %v1168 = vand.u32 %v352, 4294901760
        %1169 = vmatprep.subr.mxu0 %v1168
        %v1170 = vand.u32 %v351, 4294901760
        %1171 = vmatpush1.msra.mxu0 %v1170
        %v1172 = vand.u32 %v350, 4294901760
        %1173 = vmatprep.subr.mxu0 %v1172
        %v1174 = vand.u32 %v349, 4294901760
        %1175 = vmatpush1.msra.mxu0 %v1174
        %v1176 = vand.u32 %v348, 4294901760
        %1177 = vmatprep.subr.mxu0 %v1176
        %v1178 = vand.u32 %v347, 4294901760
        %1179 = vmatpush1.msra.mxu0 %v1178
        %v1180 = vand.u32 %v346, 4294901760
        %1181 = vmatprep.subr.mxu0 %v1180
        %v1182 = vand.u32 %v345, 4294901760
        %1183 = vmatpush1.msra.mxu0 %v1182
        %v1184 = vand.u32 %v344, 4294901760
        %1185 = vmatprep.subr.mxu0 %v1184
        %v1186 = vand.u32 %v343, 4294901760
        %1187 = vmatpush1.msra.mxu0 %v1186
        %v1188 = vand.u32 %v342, 4294901760
        %1189 = vmatprep.subr.mxu0 %v1188
        %v1190 = vand.u32 %v341, 4294901760
        %1191 = vmatpush1.msra.mxu0 %v1190
        %v1192 = vand.u32 %v340, 4294901760
        %1193 = vmatprep.subr.mxu0 %v1192
        %v1194 = vand.u32 %v339, 4294901760
        %1195 = vmatpush1.msra.mxu0 %v1194
        %v1196 = vand.u32 %v338, 4294901760
        %1197 = vmatprep.subr.mxu0 %v1196
        %v1198 = vand.u32 %v337, 4294901760
        %1199 = vmatpush1.msra.mxu0 %v1198
        %v1200 = vand.u32 %v336, 4294901760
        %1201 = vmatprep.subr.mxu0 %v1200
        %v1202 = vand.u32 %v335, 4294901760
        %1203 = vmatpush1.msra.mxu0 %v1202
        %v1204 = vand.u32 %v334, 4294901760
        %1205 = vmatprep.subr.mxu0 %v1204
        %v1206 = vand.u32 %v333, 4294901760
        %1207 = vmatpush1.msra.mxu0 %v1206
        %v1208 = vand.u32 %v332, 4294901760
        %1209 = vmatprep.subr.mxu0 %v1208
        %v1210 = vand.u32 %v331, 4294901760
        %1211 = vmatpush1.msra.mxu0 %v1210
        %v1212 = vand.u32 %v394, 4294901760
        %1213 = vmatprep.subr.mxu0 %v1212
        %v1214 = vand.u32 %v393, 4294901760
        %1215 = vmatpush2.msra.mxu0 %v1214
        %v1216 = vand.u32 %v392, 4294901760
        %1217 = vmatprep.subr.mxu0 %v1216
        %v1218 = vand.u32 %v391, 4294901760
        %1219 = vmatpush2.msra.mxu0 %v1218
        %v1220 = vand.u32 %v390, 4294901760
        %1221 = vmatprep.subr.mxu0 %v1220
        %v1222 = vand.u32 %v389, 4294901760
        %1223 = vmatpush2.msra.mxu0 %v1222
        %v1224 = vand.u32 %v388, 4294901760
        %1225 = vmatprep.subr.mxu0 %v1224
        %v1226 = vand.u32 %v387, 4294901760
        %1227 = vmatpush2.msra.mxu0 %v1226
        %v1228 = vand.u32 %v386, 4294901760
        %1229 = vmatprep.subr.mxu0 %v1228
        %v1230 = vand.u32 %v385, 4294901760
        %1231 = vmatpush2.msra.mxu0 %v1230
        %v1232 = vand.u32 %v384, 4294901760
        %1233 = vmatprep.subr.mxu0 %v1232
        %v1234 = vand.u32 %v383, 4294901760
        %1235 = vmatpush2.msra.mxu0 %v1234
        %v1236 = vand.u32 %v382, 4294901760
        %1237 = vmatprep.subr.mxu0 %v1236
        %v1238 = vand.u32 %v381, 4294901760
        %1239 = vmatpush2.msra.mxu0 %v1238
        %v1240 = vand.u32 %v380, 4294901760
        %1241 = vmatprep.subr.mxu0 %v1240
        %v1242 = vand.u32 %v379, 4294901760
        %1243 = vmatpush2.msra.mxu0 %v1242
        %v1244 = vand.u32 %v378, 4294901760
        %1245 = vmatprep.subr.mxu0 %v1244
        %v1246 = vand.u32 %v377, 4294901760
        %1247 = vmatpush2.msra.mxu0 %v1246
        %v1248 = vand.u32 %v376, 4294901760
        %1249 = vmatprep.subr.mxu0 %v1248
        %v1250 = vand.u32 %v375, 4294901760
        %1251 = vmatpush2.msra.mxu0 %v1250
        %v1252 = vand.u32 %v374, 4294901760
        %1253 = vmatprep.subr.mxu0 %v1252
        %v1254 = vand.u32 %v373, 4294901760
        %1255 = vmatpush2.msra.mxu0 %v1254
        %v1256 = vand.u32 %v372, 4294901760
        %1257 = vmatprep.subr.mxu0 %v1256
        %v1258 = vand.u32 %v371, 4294901760
        %1259 = vmatpush2.msra.mxu0 %v1258
        %v1260 = vand.u32 %v370, 4294901760
        %1261 = vmatprep.subr.mxu0 %v1260
        %v1262 = vand.u32 %v369, 4294901760
        %1263 = vmatpush2.msra.mxu0 %v1262
        %v1264 = vand.u32 %v368, 4294901760
        %1265 = vmatprep.subr.mxu0 %v1264
        %v1266 = vand.u32 %v367, 4294901760
        %1267 = vmatpush2.msra.mxu0 %v1266
        %v1268 = vand.u32 %v366, 4294901760
        %1269 = vmatprep.subr.mxu0 %v1268
        %v1270 = vand.u32 %v365, 4294901760
        %1271 = vmatpush2.msra.mxu0 %v1270
        %v1272 = vand.u32 %v364, 4294901760
        %1273 = vmatprep.subr.mxu0 %v1272
        %v1274 = vand.u32 %v363, 4294901760
        %1275 = vmatpush2.msra.mxu0 %v1274
        %v1276 = vand.u32 %v330, 4294901760
        %v1277 = vsub.f32 %v330, %v1276
        %v1278 = vand.u32 %v1277, 4294901760
        %1279 = vmatprep.mubr.f32.mxu0 %v1278
        %v1280 = vand.u32 %v329, 4294901760
        %v1281 = vsub.f32 %v329, %v1280
        %v1282 = vand.u32 %v1281, 4294901760
        %1283 = vmatmul.mubr.f32.gmra.mxu0 %v1282
        %v1284 = vpop.f32.mrf.mxu0
        %v1285 = vadd.f32 %v1144, %v1284
        %v1286 = vpop.f32.mrf.mxu0
        %v1287 = vadd.f32 %v1146, %v1286
        %1288 = vdwg.mxu0
        %v1289 = vand.u32 %v362, 4294901760
        %v1290 = vsub.f32 %v362, %v1289
        %v1291 = vand.u32 %v1290, 4294901760
        %1292 = vmatprep.subr.mxu0 %v1291
        %v1293 = vand.u32 %v361, 4294901760
        %v1294 = vsub.f32 %v361, %v1293
        %v1295 = vand.u32 %v1294, 4294901760
        %1296 = vmatpush1.msra.mxu0 %v1295
        %v1297 = vand.u32 %v360, 4294901760
        %v1298 = vsub.f32 %v360, %v1297
        %v1299 = vand.u32 %v1298, 4294901760
        %1300 = vmatprep.subr.mxu0 %v1299
        %v1301 = vand.u32 %v359, 4294901760
        %v1302 = vsub.f32 %v359, %v1301
        %v1303 = vand.u32 %v1302, 4294901760
        %1304 = vmatpush1.msra.mxu0 %v1303
        %v1305 = vand.u32 %v358, 4294901760
        %v1306 = vsub.f32 %v358, %v1305
        %v1307 = vand.u32 %v1306, 4294901760
        %1308 = vmatprep.subr.mxu0 %v1307
        %v1309 = vand.u32 %v357, 4294901760
        %v1310 = vsub.f32 %v357, %v1309
        %v1311 = vand.u32 %v1310, 4294901760
        %1312 = vmatpush1.msra.mxu0 %v1311
        %v1313 = vand.u32 %v356, 4294901760
        %v1314 = vsub.f32 %v356, %v1313
        %v1315 = vand.u32 %v1314, 4294901760
        %1316 = vmatprep.subr.mxu0 %v1315
        %v1317 = vand.u32 %v355, 4294901760
        %v1318 = vsub.f32 %v355, %v1317
        %v1319 = vand.u32 %v1318, 4294901760
        %1320 = vmatpush1.msra.mxu0 %v1319
        %v1321 = vand.u32 %v354, 4294901760
        %v1322 = vsub.f32 %v354, %v1321
        %v1323 = vand.u32 %v1322, 4294901760
        %1324 = vmatprep.subr.mxu0 %v1323
        %v1325 = vand.u32 %v353, 4294901760
        %v1326 = vsub.f32 %v353, %v1325
        %v1327 = vand.u32 %v1326, 4294901760
        %1328 = vmatpush1.msra.mxu0 %v1327
        %v1329 = vand.u32 %v352, 4294901760
        %v1330 = vsub.f32 %v352, %v1329
        %v1331 = vand.u32 %v1330, 4294901760
        %1332 = vmatprep.subr.mxu0 %v1331
        %v1333 = vand.u32 %v351, 4294901760
        %v1334 = vsub.f32 %v351, %v1333
        %v1335 = vand.u32 %v1334, 4294901760
        %1336 = vmatpush1.msra.mxu0 %v1335
        %v1337 = vand.u32 %v350, 4294901760
        %v1338 = vsub.f32 %v350, %v1337
        %v1339 = vand.u32 %v1338, 4294901760
        %1340 = vmatprep.subr.mxu0 %v1339
        %v1341 = vand.u32 %v349, 4294901760
        %v1342 = vsub.f32 %v349, %v1341
        %v1343 = vand.u32 %v1342, 4294901760
        %1344 = vmatpush1.msra.mxu0 %v1343
        %v1345 = vand.u32 %v348, 4294901760
        %v1346 = vsub.f32 %v348, %v1345
        %v1347 = vand.u32 %v1346, 4294901760
        %1348 = vmatprep.subr.mxu0 %v1347
        %v1349 = vand.u32 %v347, 4294901760
        %v1350 = vsub.f32 %v347, %v1349
        %v1351 = vand.u32 %v1350, 4294901760
        %1352 = vmatpush1.msra.mxu0 %v1351
        %v1353 = vand.u32 %v346, 4294901760
        %v1354 = vsub.f32 %v346, %v1353
        %v1355 = vand.u32 %v1354, 4294901760
        %1356 = vmatprep.subr.mxu0 %v1355
        %v1357 = vand.u32 %v345, 4294901760
        %v1358 = vsub.f32 %v345, %v1357
        %v1359 = vand.u32 %v1358, 4294901760
        %1360 = vmatpush1.msra.mxu0 %v1359
        %v1361 = vand.u32 %v344, 4294901760
        %v1362 = vsub.f32 %v344, %v1361
        %v1363 = vand.u32 %v1362, 4294901760
        %1364 = vmatprep.subr.mxu0 %v1363
        %v1365 = vand.u32 %v343, 4294901760
        %v1366 = vsub.f32 %v343, %v1365
        %v1367 = vand.u32 %v1366, 4294901760
        %1368 = vmatpush1.msra.mxu0 %v1367
        %v1369 = vand.u32 %v342, 4294901760
        %v1370 = vsub.f32 %v342, %v1369
        %v1371 = vand.u32 %v1370, 4294901760
        %1372 = vmatprep.subr.mxu0 %v1371
        %v1373 = vand.u32 %v341, 4294901760
        %v1374 = vsub.f32 %v341, %v1373
        %v1375 = vand.u32 %v1374, 4294901760
        %1376 = vmatpush1.msra.mxu0 %v1375
        %v1377 = vand.u32 %v340, 4294901760
        %v1378 = vsub.f32 %v340, %v1377
        %v1379 = vand.u32 %v1378, 4294901760
        %1380 = vmatprep.subr.mxu0 %v1379
        %v1381 = vand.u32 %v339, 4294901760
        %v1382 = vsub.f32 %v339, %v1381
        %v1383 = vand.u32 %v1382, 4294901760
        %1384 = vmatpush1.msra.mxu0 %v1383
        %v1385 = vand.u32 %v338, 4294901760
        %v1386 = vsub.f32 %v338, %v1385
        %v1387 = vand.u32 %v1386, 4294901760
        %1388 = vmatprep.subr.mxu0 %v1387
        %v1389 = vand.u32 %v337, 4294901760
        %v1390 = vsub.f32 %v337, %v1389
        %v1391 = vand.u32 %v1390, 4294901760
        %1392 = vmatpush1.msra.mxu0 %v1391
        %v1393 = vand.u32 %v336, 4294901760
        %v1394 = vsub.f32 %v336, %v1393
        %v1395 = vand.u32 %v1394, 4294901760
        %1396 = vmatprep.subr.mxu0 %v1395
        %v1397 = vand.u32 %v335, 4294901760
        %v1398 = vsub.f32 %v335, %v1397
        %v1399 = vand.u32 %v1398, 4294901760
        %1400 = vmatpush1.msra.mxu0 %v1399
        %v1401 = vand.u32 %v334, 4294901760
        %v1402 = vsub.f32 %v334, %v1401
        %v1403 = vand.u32 %v1402, 4294901760
        %1404 = vmatprep.subr.mxu0 %v1403
        %v1405 = vand.u32 %v333, 4294901760
        %v1406 = vsub.f32 %v333, %v1405
        %v1407 = vand.u32 %v1406, 4294901760
        %1408 = vmatpush1.msra.mxu0 %v1407
        %v1409 = vand.u32 %v332, 4294901760
        %v1410 = vsub.f32 %v332, %v1409
        %v1411 = vand.u32 %v1410, 4294901760
        %1412 = vmatprep.subr.mxu0 %v1411
        %v1413 = vand.u32 %v331, 4294901760
        %v1414 = vsub.f32 %v331, %v1413
        %v1415 = vand.u32 %v1414, 4294901760
        %1416 = vmatpush1.msra.mxu0 %v1415
        %v1417 = vand.u32 %v394, 4294901760
        %v1418 = vsub.f32 %v394, %v1417
        %v1419 = vand.u32 %v1418, 4294901760
        %1420 = vmatprep.subr.mxu0 %v1419
        %v1421 = vand.u32 %v393, 4294901760
        %v1422 = vsub.f32 %v393, %v1421
        %v1423 = vand.u32 %v1422, 4294901760
        %1424 = vmatpush2.msra.mxu0 %v1423
        %v1425 = vand.u32 %v392, 4294901760
        %v1426 = vsub.f32 %v392, %v1425
        %v1427 = vand.u32 %v1426, 4294901760
        %1428 = vmatprep.subr.mxu0 %v1427
        %v1429 = vand.u32 %v391, 4294901760
        %v1430 = vsub.f32 %v391, %v1429
        %v1431 = vand.u32 %v1430, 4294901760
        %1432 = vmatpush2.msra.mxu0 %v1431
        %v1433 = vand.u32 %v390, 4294901760
        %v1434 = vsub.f32 %v390, %v1433
        %v1435 = vand.u32 %v1434, 4294901760
        %1436 = vmatprep.subr.mxu0 %v1435
        %v1437 = vand.u32 %v389, 4294901760
        %v1438 = vsub.f32 %v389, %v1437
        %v1439 = vand.u32 %v1438, 4294901760
        %1440 = vmatpush2.msra.mxu0 %v1439
        %v1441 = vand.u32 %v388, 4294901760
        %v1442 = vsub.f32 %v388, %v1441
        %v1443 = vand.u32 %v1442, 4294901760
        %1444 = vmatprep.subr.mxu0 %v1443
        %v1445 = vand.u32 %v387, 4294901760
        %v1446 = vsub.f32 %v387, %v1445
        %v1447 = vand.u32 %v1446, 4294901760
        %1448 = vmatpush2.msra.mxu0 %v1447
        %v1449 = vand.u32 %v386, 4294901760
        %v1450 = vsub.f32 %v386, %v1449
        %v1451 = vand.u32 %v1450, 4294901760
        %1452 = vmatprep.subr.mxu0 %v1451
        %v1453 = vand.u32 %v385, 4294901760
        %v1454 = vsub.f32 %v385, %v1453
        %v1455 = vand.u32 %v1454, 4294901760
        %1456 = vmatpush2.msra.mxu0 %v1455
        %v1457 = vand.u32 %v384, 4294901760
        %v1458 = vsub.f32 %v384, %v1457
        %v1459 = vand.u32 %v1458, 4294901760
        %1460 = vmatprep.subr.mxu0 %v1459
        %v1461 = vand.u32 %v383, 4294901760
        %v1462 = vsub.f32 %v383, %v1461
        %v1463 = vand.u32 %v1462, 4294901760
        %1464 = vmatpush2.msra.mxu0 %v1463
        %v1465 = vand.u32 %v382, 4294901760
        %v1466 = vsub.f32 %v382, %v1465
        %v1467 = vand.u32 %v1466, 4294901760
        %1468 = vmatprep.subr.mxu0 %v1467
        %v1469 = vand.u32 %v381, 4294901760
        %v1470 = vsub.f32 %v381, %v1469
        %v1471 = vand.u32 %v1470, 4294901760
        %1472 = vmatpush2.msra.mxu0 %v1471
        %v1473 = vand.u32 %v380, 4294901760
        %v1474 = vsub.f32 %v380, %v1473
        %v1475 = vand.u32 %v1474, 4294901760
        %1476 = vmatprep.subr.mxu0 %v1475
        %v1477 = vand.u32 %v379, 4294901760
        %v1478 = vsub.f32 %v379, %v1477
        %v1479 = vand.u32 %v1478, 4294901760
        %1480 = vmatpush2.msra.mxu0 %v1479
        %v1481 = vand.u32 %v378, 4294901760
        %v1482 = vsub.f32 %v378, %v1481
        %v1483 = vand.u32 %v1482, 4294901760
        %1484 = vmatprep.subr.mxu0 %v1483
        %v1485 = vand.u32 %v377, 4294901760
        %v1486 = vsub.f32 %v377, %v1485
        %v1487 = vand.u32 %v1486, 4294901760
        %1488 = vmatpush2.msra.mxu0 %v1487
        %v1489 = vand.u32 %v376, 4294901760
        %v1490 = vsub.f32 %v376, %v1489
        %v1491 = vand.u32 %v1490, 4294901760
        %1492 = vmatprep.subr.mxu0 %v1491
        %v1493 = vand.u32 %v375, 4294901760
        %v1494 = vsub.f32 %v375, %v1493
        %v1495 = vand.u32 %v1494, 4294901760
        %1496 = vmatpush2.msra.mxu0 %v1495
        %v1497 = vand.u32 %v374, 4294901760
        %v1498 = vsub.f32 %v374, %v1497
        %v1499 = vand.u32 %v1498, 4294901760
        %1500 = vmatprep.subr.mxu0 %v1499
        %v1501 = vand.u32 %v373, 4294901760
        %v1502 = vsub.f32 %v373, %v1501
        %v1503 = vand.u32 %v1502, 4294901760
        %1504 = vmatpush2.msra.mxu0 %v1503
        %v1505 = vand.u32 %v372, 4294901760
        %v1506 = vsub.f32 %v372, %v1505
        %v1507 = vand.u32 %v1506, 4294901760
        %1508 = vmatprep.subr.mxu0 %v1507
        %v1509 = vand.u32 %v371, 4294901760
        %v1510 = vsub.f32 %v371, %v1509
        %v1511 = vand.u32 %v1510, 4294901760
        %1512 = vmatpush2.msra.mxu0 %v1511
        %v1513 = vand.u32 %v370, 4294901760
        %v1514 = vsub.f32 %v370, %v1513
        %v1515 = vand.u32 %v1514, 4294901760
        %1516 = vmatprep.subr.mxu0 %v1515
        %v1517 = vand.u32 %v369, 4294901760
        %v1518 = vsub.f32 %v369, %v1517
        %v1519 = vand.u32 %v1518, 4294901760
        %1520 = vmatpush2.msra.mxu0 %v1519
        %v1521 = vand.u32 %v368, 4294901760
        %v1522 = vsub.f32 %v368, %v1521
        %v1523 = vand.u32 %v1522, 4294901760
        %1524 = vmatprep.subr.mxu0 %v1523
        %v1525 = vand.u32 %v367, 4294901760
        %v1526 = vsub.f32 %v367, %v1525
        %v1527 = vand.u32 %v1526, 4294901760
        %1528 = vmatpush2.msra.mxu0 %v1527
        %v1529 = vand.u32 %v366, 4294901760
        %v1530 = vsub.f32 %v366, %v1529
        %v1531 = vand.u32 %v1530, 4294901760
        %1532 = vmatprep.subr.mxu0 %v1531
        %v1533 = vand.u32 %v365, 4294901760
        %v1534 = vsub.f32 %v365, %v1533
        %v1535 = vand.u32 %v1534, 4294901760
        %1536 = vmatpush2.msra.mxu0 %v1535
        %v1537 = vand.u32 %v364, 4294901760
        %v1538 = vsub.f32 %v364, %v1537
        %v1539 = vand.u32 %v1538, 4294901760
        %1540 = vmatprep.subr.mxu0 %v1539
        %v1541 = vand.u32 %v363, 4294901760
        %v1542 = vsub.f32 %v363, %v1541
        %v1543 = vand.u32 %v1542, 4294901760
        %1544 = vmatpush2.msra.mxu0 %v1543
        %v1545 = vand.u32 %v330, 4294901760
        %1546 = vmatprep.mubr.f32.mxu0 %v1545
        %v1547 = vand.u32 %v329, 4294901760
        %1548 = vmatmul.mubr.f32.gmra.mxu0 %v1547
        %v1549 = vpop.f32.mrf.mxu0
        %v1550 = vadd.f32 %v1285, %v1549
        %v1551 = vpop.f32.mrf.mxu0
        %v1552 = vadd.f32 %v1287, %v1551
        %1553 = vdwg.mxu0
        %v1554 = vand.u32 %v362, 4294901760
        %1555 = vmatprep.subr.mxu0 %v1554
        %v1556 = vand.u32 %v361, 4294901760
        %1557 = vmatpush1.msra.mxu0 %v1556
        %v1558 = vand.u32 %v360, 4294901760
        %1559 = vmatprep.subr.mxu0 %v1558
        %v1560 = vand.u32 %v359, 4294901760
        %1561 = vmatpush1.msra.mxu0 %v1560
        %v1562 = vand.u32 %v358, 4294901760
        %1563 = vmatprep.subr.mxu0 %v1562
        %v1564 = vand.u32 %v357, 4294901760
        %1565 = vmatpush1.msra.mxu0 %v1564
        %v1566 = vand.u32 %v356, 4294901760
        %1567 = vmatprep.subr.mxu0 %v1566
        %v1568 = vand.u32 %v355, 4294901760
        %1569 = vmatpush1.msra.mxu0 %v1568
        %v1570 = vand.u32 %v354, 4294901760
        %1571 = vmatprep.subr.mxu0 %v1570
        %v1572 = vand.u32 %v353, 4294901760
        %1573 = vmatpush1.msra.mxu0 %v1572
        %v1574 = vand.u32 %v352, 4294901760
        %1575 = vmatprep.subr.mxu0 %v1574
        %v1576 = vand.u32 %v351, 4294901760
        %1577 = vmatpush1.msra.mxu0 %v1576
        %v1578 = vand.u32 %v350, 4294901760
        %1579 = vmatprep.subr.mxu0 %v1578
        %v1580 = vand.u32 %v349, 4294901760
        %1581 = vmatpush1.msra.mxu0 %v1580
        %v1582 = vand.u32 %v348, 4294901760
        %1583 = vmatprep.subr.mxu0 %v1582
        %v1584 = vand.u32 %v347, 4294901760
        %1585 = vmatpush1.msra.mxu0 %v1584
        %v1586 = vand.u32 %v346, 4294901760
        %1587 = vmatprep.subr.mxu0 %v1586
        %v1588 = vand.u32 %v345, 4294901760
        %1589 = vmatpush1.msra.mxu0 %v1588
        %v1590 = vand.u32 %v344, 4294901760
        %1591 = vmatprep.subr.mxu0 %v1590
        %v1592 = vand.u32 %v343, 4294901760
        %1593 = vmatpush1.msra.mxu0 %v1592
        %v1594 = vand.u32 %v342, 4294901760
        %1595 = vmatprep.subr.mxu0 %v1594
        %v1596 = vand.u32 %v341, 4294901760
        %1597 = vmatpush1.msra.mxu0 %v1596
        %v1598 = vand.u32 %v340, 4294901760
        %1599 = vmatprep.subr.mxu0 %v1598
        %v1600 = vand.u32 %v339, 4294901760
        %1601 = vmatpush1.msra.mxu0 %v1600
        %v1602 = vand.u32 %v338, 4294901760
        %1603 = vmatprep.subr.mxu0 %v1602
        %v1604 = vand.u32 %v337, 4294901760
        %1605 = vmatpush1.msra.mxu0 %v1604
        %v1606 = vand.u32 %v336, 4294901760
        %1607 = vmatprep.subr.mxu0 %v1606
        %v1608 = vand.u32 %v335, 4294901760
        %1609 = vmatpush1.msra.mxu0 %v1608
        %v1610 = vand.u32 %v334, 4294901760
        %1611 = vmatprep.subr.mxu0 %v1610
        %v1612 = vand.u32 %v333, 4294901760
        %1613 = vmatpush1.msra.mxu0 %v1612
        %v1614 = vand.u32 %v332, 4294901760
        %1615 = vmatprep.subr.mxu0 %v1614
        %v1616 = vand.u32 %v331, 4294901760
        %1617 = vmatpush1.msra.mxu0 %v1616
        %v1618 = vand.u32 %v394, 4294901760
        %1619 = vmatprep.subr.mxu0 %v1618
        %v1620 = vand.u32 %v393, 4294901760
        %1621 = vmatpush2.msra.mxu0 %v1620
        %v1622 = vand.u32 %v392, 4294901760
        %1623 = vmatprep.subr.mxu0 %v1622
        %v1624 = vand.u32 %v391, 4294901760
        %1625 = vmatpush2.msra.mxu0 %v1624
        %v1626 = vand.u32 %v390, 4294901760
        %1627 = vmatprep.subr.mxu0 %v1626
        %v1628 = vand.u32 %v389, 4294901760
        %1629 = vmatpush2.msra.mxu0 %v1628
        %v1630 = vand.u32 %v388, 4294901760
        %1631 = vmatprep.subr.mxu0 %v1630
        %v1632 = vand.u32 %v387, 4294901760
        %1633 = vmatpush2.msra.mxu0 %v1632
        %v1634 = vand.u32 %v386, 4294901760
        %1635 = vmatprep.subr.mxu0 %v1634
        %v1636 = vand.u32 %v385, 4294901760
        %1637 = vmatpush2.msra.mxu0 %v1636
        %v1638 = vand.u32 %v384, 4294901760
        %1639 = vmatprep.subr.mxu0 %v1638
        %v1640 = vand.u32 %v383, 4294901760
        %1641 = vmatpush2.msra.mxu0 %v1640
        %v1642 = vand.u32 %v382, 4294901760
        %1643 = vmatprep.subr.mxu0 %v1642
        %v1644 = vand.u32 %v381, 4294901760
        %1645 = vmatpush2.msra.mxu0 %v1644
        %v1646 = vand.u32 %v380, 4294901760
        %1647 = vmatprep.subr.mxu0 %v1646
        %v1648 = vand.u32 %v379, 4294901760
        %1649 = vmatpush2.msra.mxu0 %v1648
        %v1650 = vand.u32 %v378, 4294901760
        %1651 = vmatprep.subr.mxu0 %v1650
        %v1652 = vand.u32 %v377, 4294901760
        %1653 = vmatpush2.msra.mxu0 %v1652
        %v1654 = vand.u32 %v376, 4294901760
        %1655 = vmatprep.subr.mxu0 %v1654
        %v1656 = vand.u32 %v375, 4294901760
        %1657 = vmatpush2.msra.mxu0 %v1656
        %v1658 = vand.u32 %v374, 4294901760
        %1659 = vmatprep.subr.mxu0 %v1658
        %v1660 = vand.u32 %v373, 4294901760
        %1661 = vmatpush2.msra.mxu0 %v1660
        %v1662 = vand.u32 %v372, 4294901760
        %1663 = vmatprep.subr.mxu0 %v1662
        %v1664 = vand.u32 %v371, 4294901760
        %1665 = vmatpush2.msra.mxu0 %v1664
        %v1666 = vand.u32 %v370, 4294901760
        %1667 = vmatprep.subr.mxu0 %v1666
        %v1668 = vand.u32 %v369, 4294901760
        %1669 = vmatpush2.msra.mxu0 %v1668
        %v1670 = vand.u32 %v368, 4294901760
        %1671 = vmatprep.subr.mxu0 %v1670
        %v1672 = vand.u32 %v367, 4294901760
        %1673 = vmatpush2.msra.mxu0 %v1672
        %v1674 = vand.u32 %v366, 4294901760
        %1675 = vmatprep.subr.mxu0 %v1674
        %v1676 = vand.u32 %v365, 4294901760
        %1677 = vmatpush2.msra.mxu0 %v1676
        %v1678 = vand.u32 %v364, 4294901760
        %1679 = vmatprep.subr.mxu0 %v1678
        %v1680 = vand.u32 %v363, 4294901760
        %1681 = vmatpush2.msra.mxu0 %v1680
        %v1682 = vand.u32 %v330, 4294901760
        %1683 = vmatprep.mubr.f32.mxu0 %v1682
        %v1684 = vand.u32 %v329, 4294901760
        %1685 = vmatmul.mubr.f32.gmra.mxu0 %v1684
        %v1686 = vpop.f32.mrf.mxu0
        %v1687 = vadd.f32 %v1550, %v1686
        %v1688 = vpop.f32.mrf.mxu0
        %v1689 = vadd.f32 %v1552, %v1688
        %1690 = vdwg.mxu0
        %v1691 = vmul.f32 %v1687, %v1687
        %v1692 = vmul.f32 %v1689, %v1689
        %v1693 = vadd.f32 %v1691, %v1692
        %1694 = vadd.xlane.f32.xlu0 %v1693
        %v1695 = vpop.xlane.xlu0 %1694
        %v1696 = vrsqrt.pop %v1695
        %v1697 = vmul.f32 %v1695, %v1696
        %vm1698 = vcmp.eq.f32.partialorder %v1695, inf
        %v1699 = vsel %vm1698, %v1695, %v1697
        %vm1700 = vcmp.eq.f32.partialorder %v1695, 0.0
        %v1701 = vand.u32 %v1695, 2147483648
        %v1702 = vsel %vm1700, %v1701, %v1699
        %s1703 = sld [smem:[#allocation2]]
        %v1704 = vmax.f32 %v1702, 1e-12
        %v1705 = vstv %s1703
        %v1706 = vrcp.pop %v1704
        %v1707 = vmul.f32 %v1705, %v1706
        %v1708 = vmul.f32 %v1687, %v1707
        %v1709 = vmul.f32 %v1689, %v1707
        %1710 = vst [vmem:[%s283] sm:$0xff] %v1708
        %1711 = vst [vmem:[%s283 + $0x8] sm:$0xff] %v1709
        %s1712 = sand.u32 %s164, 1
        %s1713 = scalar_lea.sflag [#allocation5], %s1712
        %s1714 = sand.u32 %s164, 1
        %s1715 = smul.addr %s1714, 16
        %s1716 = scalar_lea.vmem [#allocation8], %s1715
        // Predicated region
        $region53: #{tpu_custom_call.1} parent=43 // pred_check
          %p1717 = pneg %p174
        $region54: #{tpu_custom_call.1} parent=43 // pred_check_branch
          %1719 = sbr.rel (%p1717) target = $region56
        $region55: #{tpu_custom_call.1} parent=43 // pred_region
          %s1721 = ssub.s32 256, 256
          %1722 = vsyncadd %s1713, %s1721
          %s1723 = smul.addr %s25, 2
          %s1724 = smul.addr %s1723, 128
          %s1725 = scalar_lea.hbm %s6, %s1724
          %s1727 = sshll.u32 %s1716, 4
          %s1728 = int_to_ptr.vmem [resolvable:$true] %s1727
          %1730 = dma.vmem_to_hbm [thread:$0]  %s1728, 256, %s1725, %s1713
        $region56: #{tpu_custom_call.1} parent=43 // pred_fallthru
          _
      $region44: #{tpu_custom_call.1} parent=5 // pred_fallthru
        _
      %p1731 = scmp.le.s32.totalorder 2, %s20
      // Predicated region
      $region57: #{tpu_custom_call.1} parent=5 // pred_check
        %p1732 = pneg %p1731
      $region58: #{tpu_custom_call.1} parent=5 // pred_check_branch
        %1734 = sbr.rel (%p1732) target = $region60
      $region59: #{tpu_custom_call.1} parent=5 // pred_region
        %s1735 = ssub.s32 %s20, 2
        // Predicated region
        $region61: #{tpu_custom_call.1} parent=59 // pred_check
          %p1736 = pneg %p180
        $region62: #{tpu_custom_call.1} parent=59 // pred_check_branch
          %1738 = sbr.rel (%p1736) target = $region64
        $region63: #{tpu_custom_call.1} parent=59 // pred_region
          %s1739 = sand.u32 %s165, 1
          %s1740 = scalar_lea.sflag [#allocation5], %s1739
          %s1741 = sand.u32 %s165, 1
          %s1742 = smul.addr %s1741, 16
          %s1743 = scalar_lea.vmem [#allocation8], %s1742
          %1744 = dma.done %s1740, 256
        $region64: #{tpu_custom_call.1} parent=59 // pred_fallthru
          _
      $region60: #{tpu_custom_call.1} parent=5 // pred_fallthru
        _
    $region6: #{tpu_custom_call.1} parent=1 // loop_footer
      %s24 = sadd.s32 1, %s20
    $region7: #{tpu_custom_call.1} parent=1 // loop_footer_branch
      %19 = sbr.rel target = $region3
    $region8: #{tpu_custom_call.1} parent=1 // loop_exit
      _
    %1745 = vsyncpa [#allocation4], 1
    %s1746 = scalar_lea.sflag [#allocation4], 1
    %1747 = vsyncpa %s1746, 1
    %1748 = vsyncpa [#allocation7], 1
    %1749 = vsyncpa [#allocation5], 1
    %s1750 = scalar_lea.sflag [#allocation5], 1
    %1751 = vsyncpa %s1750, 1

</llo_original>
